<compile_context>
chip_gen: v6e
topology: v6e:2x2x1
jax: 0.10.0
libtpu: 0.0.40
codegen_flags: <defaults>
</compile_context>

<pallas_src>
import functools

import jax
import jax.numpy as jnp
from jax.experimental import pallas as pl
from jax.experimental.pallas import tpu as pltpu


# Images per grid step.  Keep per-block VMEM (dominated by the (152, B*HW)
# f32 im2col stack of the 10->5 layer) comfortably under ~32 MiB so it fits
# the scoped-VMEM limit on every generation (v7x: 64 MiB physical).
# v5e/v6e (128 MiB VMEM) could raise this further.
_B_CAP = 32


# ----------------------------------------------------------------------------
# Fused Pallas kernel: 4 x (3x3 same-padding conv) + ReLU/Sigmoid
# ----------------------------------------------------------------------------
def _fused_autoencoder_kernel(x_ref, m_ref, w1_ref, w2_ref, w3_ref, w4_ref,
                              o_ref, *, W):
    # x_ref : (8, B*HW)            B images, channels (padded to 8) on
    #                              sublanes, all pixels on lanes
    # m_ref : (9, B*HW)            per-tap border-validity masks (f32 0/1)
    # wi_ref: (Cout_pad, 9*Cin_pad + 8)  repacked weights, bias folded into
    #                              column 9*Cin_pad
    # o_ref : (8, B*HW)            first 3 rows are the real output channels
    BHW = x_ref.shape[1]

    # Ones block for the folded bias (hoisted: built once, reused 4x).
    ones8 = jnp.ones((8, BHW), jnp.float32)

    def conv3x3(x, w_ref, act):
        # x: (Cin_pad, BHW) f32 -> (Cout_pad, BHW) f32, single MXU dispatch.
        pieces = []
        for k in range(9):                      # unrolled at trace time
            dy, dx = k // 3, k % 3
            off = (dy - 1) * W + (dx - 1)       # shifted[p] = x[p + off]
            t = x if off == 0 else pltpu.roll(x, (-off) % BHW, axis=1)
            if k != 4:                          # center tap always valid
                t = t * m_ref[k:k + 1, :]       # (1, BHW) broadcast, short-lived
            pieces.append(t)
        pieces.append(ones8)                    # bias row(s)
        # All pieces are 8- or 16-sublane tall -> tile-aligned concat.
        stack = jnp.concatenate(pieces, axis=0)  # (9*Cin_pad + 8, BHW)
        y = jnp.dot(w_ref[...], stack, preferred_element_type=jnp.float32)
        if act == "relu":
            y = jnp.maximum(y, 0.0)
        elif act == "sigmoid":
            y = jax.nn.sigmoid(y)
        return y

    x = x_ref[...]                              # (8, BHW)
    h = conv3x3(x, w1_ref, "relu")              # encoder conv 3 -> 5   (8, BHW)
    h = conv3x3(h, w2_ref, "none")              # encoder conv 5 -> 10  (16, BHW)
    h = conv3x3(h, w3_ref, "relu")              # decoder convT 10 -> 5 (8, BHW)
    o_ref[...] = conv3x3(h, w4_ref, "sigmoid")  # decoder convT 5 -> 3  (8, BHW)


# ----------------------------------------------------------------------------
# Weight-format helpers (one-time glue, plain JAX)
# ----------------------------------------------------------------------------
def conv_weight_pack(w_pt):
    """PyTorch Conv2d weight (Cout, Cin, 3, 3) -> (9, Cout, Cin), k = dy*3+dx."""
    Cout, Cin = w_pt.shape[0], w_pt.shape[1]
    return jnp.transpose(w_pt, (2, 3, 0, 1)).reshape(9, Cout, Cin).astype(jnp.float32)


def convT_weight_pack(w_pt):
    """PyTorch ConvTranspose2d weight (Cin, Cout, 3, 3) -> equivalent conv (9, Cout, Cin).

    ConvTranspose2d(stride=1, padding=1, k=3) == Conv2d(padding=1) with the
    kernel spatially flipped and in/out channel axes swapped.
    """
    Cin, Cout = w_pt.shape[0], w_pt.shape[1]
    w_flip = jnp.flip(w_pt, axis=(2, 3))
    return jnp.transpose(w_flip, (2, 3, 1, 0)).reshape(9, Cout, Cin).astype(jnp.float32)


def _pack_layer(w9, b, cin_pad, cout_pad):
    """(9, Cout, Cin) taps + (Cout,) bias -> (cout_pad, 9*cin_pad + 8).

    Tap k occupies columns [k*cin_pad, k*cin_pad+Cin); bias goes into column
    9*cin_pad (matching the appended ones block); everything else is zero so
    padded channels stay exactly zero through the network.
    """
    _, Cout, Cin = w9.shape
    wp = jnp.zeros((cout_pad, 9 * cin_pad + 8), jnp.float32)
    for k in range(9):
        wp = wp.at[:Cout, k * cin_pad:k * cin_pad + Cin].set(w9[k])
    wp = wp.at[:Cout, 9 * cin_pad].set(b.astype(jnp.float32))
    return wp


def _build_masks(H, W, B):
    """(9, B*HW) f32 border-validity masks, computed per-image via pos % HW."""
    HW = H * W
    pos = jnp.arange(B * HW, dtype=jnp.int32) % HW
    row = pos // W
    col = pos % W
    rows = []
    for dy in range(3):
        for dx in range(3):
            v = jnp.ones((B * HW,), jnp.bool_)
            if dy == 0:
                v = v & (row >= 1)
            if dy == 2:
                v = v & (row <= H - 2)
            if dx == 0:
                v = v & (col >= 1)
            if dx == 2:
                v = v & (col <= W - 2)
            rows.append(v)
    return jnp.stack(rows, axis=0).astype(jnp.float32)


# ----------------------------------------------------------------------------
# Full autoencoder forward (single fused pallas_call)
# ----------------------------------------------------------------------------
def simple_autoencoder_forward(x_nchw, params):
    N, Cin, H, W = x_nchw.shape
    assert Cin == 3, "SimpleAutoencoder expects 3 input channels"
    HW = H * W

    B = min(N, _B_CAP)                     # images per grid step
    G = -(-N // B)                         # grid length
    NB = G * B                             # batch padded to a multiple of B

    # (N, C, H, W) -> (C, N*HW), pad channels to 8 sublanes and batch to NB.
    x = jnp.transpose(x_nchw.astype(jnp.float32), (1, 0, 2, 3)).reshape(Cin, N * HW)
    x = jnp.pad(x, ((0, 8 - Cin), (0, (NB - N) * HW)))

    mask = _build_masks(H, W, B)           # (9, B*HW)

    # Repacked weights (bias folded in), channel dims padded to 8 / 16.
    w1 = _pack_layer(conv_weight_pack(params["enc0_w"]), params["enc0_b"], 8, 8)
    w2 = _pack_layer(conv_weight_pack(params["enc1_w"]), params["enc1_b"], 8, 16)
    w3 = _pack_layer(convT_weight_pack(params["dec0_w"]), params["dec0_b"], 16, 8)
    w4 = _pack_layer(convT_weight_pack(params["dec1_w"]), params["dec1_b"], 8, 8)

    kernel = functools.partial(_fused_autoencoder_kernel, W=W)
    const2 = lambda n: (0, 0)              # weights / mask: DMA'd once

    out = pl.pallas_call(
        kernel,
        out_shape=jax.ShapeDtypeStruct((8, NB * HW), jnp.float32),
        grid_spec=pltpu.PrefetchScalarGridSpec(
            num_scalar_prefetch=0,
            grid=(G,),
            in_specs=[
                pl.BlockSpec((8, B * HW), lambda n: (0, n)),   # x block
                pl.BlockSpec((9, B * HW), const2),             # masks
                pl.BlockSpec(w1.shape, const2),
                pl.BlockSpec(w2.shape, const2),
                pl.BlockSpec(w3.shape, const2),
                pl.BlockSpec(w4.shape, const2),
            ],
            out_specs=pl.BlockSpec((8, B * HW), lambda n: (0, n)),
        ),
        compiler_params=pltpu.CompilerParams(
            dimension_semantics=("parallel",),        # lets v7x split the batch
            vmem_limit_bytes=32 * 1024 * 1024),
    )(x, mask, w1, w2, w3, w4)

    # Drop padded output channels / padded images, back to NCHW.
    out = out[:3, :N * HW].reshape(3, N, H, W)
    return jnp.transpose(out, (1, 0, 2, 3))


# ----------------------------------------------------------------------------
# Pure-JAX reference (same converted weights) for a sanity check
# ----------------------------------------------------------------------------
def _ref_conv_nchw(x, w_k, b, act):
    Cout, Cin = w_k.shape[1], w_k.shape[2]
    w_oihw = jnp.transpose(w_k.reshape(3, 3, Cout, Cin), (2, 3, 0, 1))
    y = jax.lax.conv_general_dilated(
        x, w_oihw, window_strides=(1, 1), padding=((1, 1), (1, 1)),
        dimension_numbers=("NCHW", "OIHW", "NCHW"),
        precision=jax.lax.Precision.HIGHEST)
    y = y + b.reshape(1, Cout, 1, 1)
    if act == "relu":
        y = jnp.maximum(y, 0.0)
    elif act == "sigmoid":
        y = jax.nn.sigmoid(y)
    return y


def _ref_forward(x_nchw, params):
    x = x_nchw.astype(jnp.float32)
    x = _ref_conv_nchw(x, conv_weight_pack(params["enc0_w"]), params["enc0_b"], "relu")
    x = _ref_conv_nchw(x, conv_weight_pack(params["enc1_w"]), params["enc1_b"], "none")
    x = _ref_conv_nchw(x, convT_weight_pack(params["dec0_w"]), params["dec0_b"], "relu")
    x = _ref_conv_nchw(x, convT_weight_pack(params["dec1_w"]), params["dec1_b"], "sigmoid")
    return x


# ----------------------------------------------------------------------------
# Deterministic parameter init (matches module's layer shapes)
# ----------------------------------------------------------------------------
def init_params(key):
    ks = jax.random.split(key, 8)

    def u(k, shape, fan_in):
        bound = 1.0 / jnp.sqrt(fan_in)
        return jax.random.uniform(k, shape, jnp.float32, -bound, bound)

    return {
        # Conv2d(3, 5, 3, padding=1): weight (5, 3, 3, 3), bias (5,)
        "enc0_w": u(ks[0], (5, 3, 3, 3), 3 * 9), "enc0_b": u(ks[1], (5,), 3 * 9),
        # Conv2d(5, 10, 3, padding=1): weight (10, 5, 3, 3), bias (10,)
        "enc1_w": u(ks[2], (10, 5, 3, 3), 5 * 9), "enc1_b": u(ks[3], (10,), 5 * 9),
        # ConvTranspose2d(10, 5, 3, padding=1): weight (10, 5, 3, 3), bias (5,)
        "dec0_w": u(ks[4], (10, 5, 3, 3), 10 * 9), "dec0_b": u(ks[5], (5,), 10 * 9),
        # ConvTranspose2d(5, 3, 3, padding=1): weight (5, 3, 3, 3), bias (3,)
        "dec1_w": u(ks[6], (5, 3, 3, 3), 5 * 9), "dec1_b": u(ks[7], (3,), 5 * 9),
    }


if __name__ == "__main__":
    key = jax.random.PRNGKey(0)
    k_param, k_x = jax.random.split(key)
    params = init_params(k_param)

    # NCHW input, like the PyTorch module: (batch=2, channels=3, 16, 16)
    x = jax.random.uniform(k_x, (2, 3, 16, 16), jnp.float32)

    fwd = jax.jit(simple_autoencoder_forward)
    out = jax.block_until_ready(fwd(x, params))
    assert out.shape == (2, 3, 16, 16), out.shape

    ref = jax.block_until_ready(_ref_forward(x, params))
    err = float(jnp.max(jnp.abs(out - ref)))
    assert jnp.allclose(out, ref, atol=1e-4, rtol=1e-4), f"mismatch vs reference, max |err|={err}"

    print("KERNEL_OK")
</pallas_src>

<mosaic_0001>
module attributes {stable_mosaic.version = 11 : i64} {
  func.func @_fused_autoencoder_kernel(%arg0: i32, %arg1: memref<8x512xf32, #tpu.memory_space<vmem>>, %arg2: memref<9x512xf32, #tpu.memory_space<vmem>>, %arg3: memref<8x80xf32, #tpu.memory_space<vmem>>, %arg4: memref<16x80xf32, #tpu.memory_space<vmem>>, %arg5: memref<8x152xf32, #tpu.memory_space<vmem>>, %arg6: memref<8x80xf32, #tpu.memory_space<vmem>>, %arg7: memref<8x512xf32, #tpu.memory_space<vmem>>) attributes {dimension_semantics = [#tpu.dimension_semantics<parallel>], iteration_bounds = array<i64: 1>, scalar_prefetch = 0 : i64, scratch_operands = 0 : i64, tpu.core_type = #tpu.core_type<tc>, window_params = [{transform_indices = @transform_0, window_bounds = array<i64: 8, 512>}, {pipeline_mode = #tpu.pipeline_mode<synchronous>, transform_indices = @transform_1, window_bounds = array<i64: 9, 512>}, {pipeline_mode = #tpu.pipeline_mode<synchronous>, transform_indices = @transform_2, window_bounds = array<i64: 8, 80>}, {pipeline_mode = #tpu.pipeline_mode<synchronous>, transform_indices = @transform_3, window_bounds = array<i64: 16, 80>}, {pipeline_mode = #tpu.pipeline_mode<synchronous>, transform_indices = @transform_4, window_bounds = array<i64: 8, 152>}, {pipeline_mode = #tpu.pipeline_mode<synchronous>, transform_indices = @transform_5, window_bounds = array<i64: 8, 80>}, {transform_indices = @transform_6, window_bounds = array<i64: 8, 512>}]} {
    %cst = arith.constant 1.000000e+00 : f32
    %0 = vector.broadcast %cst : f32 to vector<8x512xf32>
    %c0 = arith.constant 0 : index
    %c0_0 = arith.constant 0 : index
    %1 = vector.load %arg1[%c0, %c0_0] : memref<8x512xf32, #tpu.memory_space<vmem>>, vector<8x512xf32>
    %c17_i32 = arith.constant 17 : i32
    %2 = tpu.dynamic_rotate %1 by %c17_i32 dim 1 : vector<8x512xf32>, i32 -> vector<8x512xf32>
    %c0_1 = arith.constant 0 : index
    %c0_2 = arith.constant 0 : index
    %3 = vector.load %arg2[%c0_1, %c0_2] : memref<9x512xf32, #tpu.memory_space<vmem>>, vector<1x512xf32>
    %4 = vector.broadcast %3 : vector<1x512xf32> to vector<8x512xf32>
    %5 = arith.mulf %2, %4 : vector<8x512xf32>
    %c16_i32 = arith.constant 16 : i32
    %6 = tpu.dynamic_rotate %1 by %c16_i32 dim 1 : vector<8x512xf32>, i32 -> vector<8x512xf32>
    %c1 = arith.constant 1 : index
    %c0_3 = arith.constant 0 : index
    %7 = vector.load %arg2[%c1, %c0_3] : memref<9x512xf32, #tpu.memory_space<vmem>>, vector<1x512xf32>
    %8 = vector.broadcast %7 : vector<1x512xf32> to vector<8x512xf32>
    %9 = arith.mulf %6, %8 : vector<8x512xf32>
    %c15_i32 = arith.constant 15 : i32
    %10 = tpu.dynamic_rotate %1 by %c15_i32 dim 1 : vector<8x512xf32>, i32 -> vector<8x512xf32>
    %c2 = arith.constant 2 : index
    %c0_4 = arith.constant 0 : index
    %11 = vector.load %arg2[%c2, %c0_4] : memref<9x512xf32, #tpu.memory_space<vmem>>, vector<1x512xf32>
    %12 = vector.broadcast %11 : vector<1x512xf32> to vector<8x512xf32>
    %13 = arith.mulf %10, %12 : vector<8x512xf32>
    %c1_i32 = arith.constant 1 : i32
    %14 = tpu.dynamic_rotate %1 by %c1_i32 dim 1 : vector<8x512xf32>, i32 -> vector<8x512xf32>
    %c3 = arith.constant 3 : index
    %c0_5 = arith.constant 0 : index
    %15 = vector.load %arg2[%c3, %c0_5] : memref<9x512xf32, #tpu.memory_space<vmem>>, vector<1x512xf32>
    %16 = vector.broadcast %15 : vector<1x512xf32> to vector<8x512xf32>
    %17 = arith.mulf %14, %16 : vector<8x512xf32>
    %c511_i32 = arith.constant 511 : i32
    %18 = tpu.dynamic_rotate %1 by %c511_i32 dim 1 : vector<8x512xf32>, i32 -> vector<8x512xf32>
    %c5 = arith.constant 5 : index
    %c0_6 = arith.constant 0 : index
    %19 = vector.load %arg2[%c5, %c0_6] : memref<9x512xf32, #tpu.memory_space<vmem>>, vector<1x512xf32>
    %20 = vector.broadcast %19 : vector<1x512xf32> to vector<8x512xf32>
    %21 = arith.mulf %18, %20 : vector<8x512xf32>
    %c497_i32 = arith.constant 497 : i32
    %22 = tpu.dynamic_rotate %1 by %c497_i32 dim 1 : vector<8x512xf32>, i32 -> vector<8x512xf32>
    %c6 = arith.constant 6 : index
    %c0_7 = arith.constant 0 : index
    %23 = vector.load %arg2[%c6, %c0_7] : memref<9x512xf32, #tpu.memory_space<vmem>>, vector<1x512xf32>
    %24 = vector.broadcast %23 : vector<1x512xf32> to vector<8x512xf32>
    %25 = arith.mulf %22, %24 : vector<8x512xf32>
    %c496_i32 = arith.constant 496 : i32
    %26 = tpu.dynamic_rotate %1 by %c496_i32 dim 1 : vector<8x512xf32>, i32 -> vector<8x512xf32>
    %c7 = arith.constant 7 : index
    %c0_8 = arith.constant 0 : index
    %27 = vector.load %arg2[%c7, %c0_8] : memref<9x512xf32, #tpu.memory_space<vmem>>, vector<1x512xf32>
    %28 = vector.broadcast %27 : vector<1x512xf32> to vector<8x512xf32>
    %29 = arith.mulf %26, %28 : vector<8x512xf32>
    %c495_i32 = arith.constant 495 : i32
    %30 = tpu.dynamic_rotate %1 by %c495_i32 dim 1 : vector<8x512xf32>, i32 -> vector<8x512xf32>
    %c8 = arith.constant 8 : index
    %c0_9 = arith.constant 0 : index
    %31 = vector.load %arg2[%c8, %c0_9] : memref<9x512xf32, #tpu.memory_space<vmem>>, vector<1x512xf32>
    %32 = vector.broadcast %31 : vector<1x512xf32> to vector<8x512xf32>
    %33 = arith.mulf %30, %32 : vector<8x512xf32>
    %34 = tpu.concatenate %5, %9, %13, %17, %1, %21, %25, %29, %33, %0 in 0 : vector<8x512xf32>, vector<8x512xf32>, vector<8x512xf32>, vector<8x512xf32>, vector<8x512xf32>, vector<8x512xf32>, vector<8x512xf32>, vector<8x512xf32>, vector<8x512xf32>, vector<8x512xf32> -> vector<80x512xf32>
    %c0_10 = arith.constant 0 : index
    %c0_11 = arith.constant 0 : index
    %35 = vector.load %arg3[%c0_10, %c0_11] : memref<8x80xf32, #tpu.memory_space<vmem>>, vector<8x80xf32>
    %cst_12 = arith.constant dense<0.000000e+00> : vector<8x512xf32>
    %36 = tpu.matmul %35, %34, %cst_12 {dimension_numbers = #tpu.dot_dimension_numbers<[1], [0], [0], [1], [0, 0, 1, 1], [], []>} : vector<8x80xf32>, vector<80x512xf32>, vector<8x512xf32> -> vector<8x512xf32>
    %cst_13 = arith.constant 0.000000e+00 : f32
    %37 = vector.broadcast %cst_13 : f32 to vector<8x512xf32>
    %38 = arith.maximumf %36, %37 : vector<8x512xf32>
    %c17_i32_14 = arith.constant 17 : i32
    %39 = tpu.dynamic_rotate %38 by %c17_i32_14 dim 1 : vector<8x512xf32>, i32 -> vector<8x512xf32>
    %c0_15 = arith.constant 0 : index
    %c0_16 = arith.constant 0 : index
    %40 = vector.load %arg2[%c0_15, %c0_16] : memref<9x512xf32, #tpu.memory_space<vmem>>, vector<1x512xf32>
    %41 = vector.broadcast %40 : vector<1x512xf32> to vector<8x512xf32>
    %42 = arith.mulf %39, %41 : vector<8x512xf32>
    %c16_i32_17 = arith.constant 16 : i32
    %43 = tpu.dynamic_rotate %38 by %c16_i32_17 dim 1 : vector<8x512xf32>, i32 -> vector<8x512xf32>
    %c1_18 = arith.constant 1 : index
    %c0_19 = arith.constant 0 : index
    %44 = vector.load %arg2[%c1_18, %c0_19] : memref<9x512xf32, #tpu.memory_space<vmem>>, vector<1x512xf32>
    %45 = vector.broadcast %44 : vector<1x512xf32> to vector<8x512xf32>
    %46 = arith.mulf %43, %45 : vector<8x512xf32>
    %c15_i32_20 = arith.constant 15 : i32
    %47 = tpu.dynamic_rotate %38 by %c15_i32_20 dim 1 : vector<8x512xf32>, i32 -> vector<8x512xf32>
    %c2_21 = arith.constant 2 : index
    %c0_22 = arith.constant 0 : index
    %48 = vector.load %arg2[%c2_21, %c0_22] : memref<9x512xf32, #tpu.memory_space<vmem>>, vector<1x512xf32>
    %49 = vector.broadcast %48 : vector<1x512xf32> to vector<8x512xf32>
    %50 = arith.mulf %47, %49 : vector<8x512xf32>
    %c1_i32_23 = arith.constant 1 : i32
    %51 = tpu.dynamic_rotate %38 by %c1_i32_23 dim 1 : vector<8x512xf32>, i32 -> vector<8x512xf32>
    %c3_24 = arith.constant 3 : index
    %c0_25 = arith.constant 0 : index
    %52 = vector.load %arg2[%c3_24, %c0_25] : memref<9x512xf32, #tpu.memory_space<vmem>>, vector<1x512xf32>
    %53 = vector.broadcast %52 : vector<1x512xf32> to vector<8x512xf32>
    %54 = arith.mulf %51, %53 : vector<8x512xf32>
    %c511_i32_26 = arith.constant 511 : i32
    %55 = tpu.dynamic_rotate %38 by %c511_i32_26 dim 1 : vector<8x512xf32>, i32 -> vector<8x512xf32>
    %c5_27 = arith.constant 5 : index
    %c0_28 = arith.constant 0 : index
    %56 = vector.load %arg2[%c5_27, %c0_28] : memref<9x512xf32, #tpu.memory_space<vmem>>, vector<1x512xf32>
    %57 = vector.broadcast %56 : vector<1x512xf32> to vector<8x512xf32>
    %58 = arith.mulf %55, %57 : vector<8x512xf32>
    %c497_i32_29 = arith.constant 497 : i32
    %59 = tpu.dynamic_rotate %38 by %c497_i32_29 dim 1 : vector<8x512xf32>, i32 -> vector<8x512xf32>
    %c6_30 = arith.constant 6 : index
    %c0_31 = arith.constant 0 : index
    %60 = vector.load %arg2[%c6_30, %c0_31] : memref<9x512xf32, #tpu.memory_space<vmem>>, vector<1x512xf32>
    %61 = vector.broadcast %60 : vector<1x512xf32> to vector<8x512xf32>
    %62 = arith.mulf %59, %61 : vector<8x512xf32>
    %c496_i32_32 = arith.constant 496 : i32
    %63 = tpu.dynamic_rotate %38 by %c496_i32_32 dim 1 : vector<8x512xf32>, i32 -> vector<8x512xf32>
    %c7_33 = arith.constant 7 : index
    %c0_34 = arith.constant 0 : index
    %64 = vector.load %arg2[%c7_33, %c0_34] : memref<9x512xf32, #tpu.memory_space<vmem>>, vector<1x512xf32>
    %65 = vector.broadcast %64 : vector<1x512xf32> to vector<8x512xf32>
    %66 = arith.mulf %63, %65 : vector<8x512xf32>
    %c495_i32_35 = arith.constant 495 : i32
    %67 = tpu.dynamic_rotate %38 by %c495_i32_35 dim 1 : vector<8x512xf32>, i32 -> vector<8x512xf32>
    %c8_36 = arith.constant 8 : index
    %c0_37 = arith.constant 0 : index
    %68 = vector.load %arg2[%c8_36, %c0_37] : memref<9x512xf32, #tpu.memory_space<vmem>>, vector<1x512xf32>
    %69 = vector.broadcast %68 : vector<1x512xf32> to vector<8x512xf32>
    %70 = arith.mulf %67, %69 : vector<8x512xf32>
    %71 = tpu.concatenate %42, %46, %50, %54, %38, %58, %62, %66, %70, %0 in 0 : vector<8x512xf32>, vector<8x512xf32>, vector<8x512xf32>, vector<8x512xf32>, vector<8x512xf32>, vector<8x512xf32>, vector<8x512xf32>, vector<8x512xf32>, vector<8x512xf32>, vector<8x512xf32> -> vector<80x512xf32>
    %c0_38 = arith.constant 0 : index
    %c0_39 = arith.constant 0 : index
    %72 = vector.load %arg4[%c0_38, %c0_39] : memref<16x80xf32, #tpu.memory_space<vmem>>, vector<16x80xf32>
    %cst_40 = arith.constant dense<0.000000e+00> : vector<16x512xf32>
    %73 = tpu.matmul %72, %71, %cst_40 {dimension_numbers = #tpu.dot_dimension_numbers<[1], [0], [0], [1], [0, 0, 1, 1], [], []>} : vector<16x80xf32>, vector<80x512xf32>, vector<16x512xf32> -> vector<16x512xf32>
    %c17_i32_41 = arith.constant 17 : i32
    %74 = tpu.dynamic_rotate %73 by %c17_i32_41 dim 1 : vector<16x512xf32>, i32 -> vector<16x512xf32>
    %c0_42 = arith.constant 0 : index
    %c0_43 = arith.constant 0 : index
    %75 = vector.load %arg2[%c0_42, %c0_43] : memref<9x512xf32, #tpu.memory_space<vmem>>, vector<1x512xf32>
    %76 = vector.broadcast %75 : vector<1x512xf32> to vector<16x512xf32>
    %77 = arith.mulf %74, %76 : vector<16x512xf32>
    %c16_i32_44 = arith.constant 16 : i32
    %78 = tpu.dynamic_rotate %73 by %c16_i32_44 dim 1 : vector<16x512xf32>, i32 -> vector<16x512xf32>
    %c1_45 = arith.constant 1 : index
    %c0_46 = arith.constant 0 : index
    %79 = vector.load %arg2[%c1_45, %c0_46] : memref<9x512xf32, #tpu.memory_space<vmem>>, vector<1x512xf32>
    %80 = vector.broadcast %79 : vector<1x512xf32> to vector<16x512xf32>
    %81 = arith.mulf %78, %80 : vector<16x512xf32>
    %c15_i32_47 = arith.constant 15 : i32
    %82 = tpu.dynamic_rotate %73 by %c15_i32_47 dim 1 : vector<16x512xf32>, i32 -> vector<16x512xf32>
    %c2_48 = arith.constant 2 : index
    %c0_49 = arith.constant 0 : index
    %83 = vector.load %arg2[%c2_48, %c0_49] : memref<9x512xf32, #tpu.memory_space<vmem>>, vector<1x512xf32>
    %84 = vector.broadcast %83 : vector<1x512xf32> to vector<16x512xf32>
    %85 = arith.mulf %82, %84 : vector<16x512xf32>
    %c1_i32_50 = arith.constant 1 : i32
    %86 = tpu.dynamic_rotate %73 by %c1_i32_50 dim 1 : vector<16x512xf32>, i32 -> vector<16x512xf32>
    %c3_51 = arith.constant 3 : index
    %c0_52 = arith.constant 0 : index
    %87 = vector.load %arg2[%c3_51, %c0_52] : memref<9x512xf32, #tpu.memory_space<vmem>>, vector<1x512xf32>
    %88 = vector.broadcast %87 : vector<1x512xf32> to vector<16x512xf32>
    %89 = arith.mulf %86, %88 : vector<16x512xf32>
    %c511_i32_53 = arith.constant 511 : i32
    %90 = tpu.dynamic_rotate %73 by %c511_i32_53 dim 1 : vector<16x512xf32>, i32 -> vector<16x512xf32>
    %c5_54 = arith.constant 5 : index
    %c0_55 = arith.constant 0 : index
    %91 = vector.load %arg2[%c5_54, %c0_55] : memref<9x512xf32, #tpu.memory_space<vmem>>, vector<1x512xf32>
    %92 = vector.broadcast %91 : vector<1x512xf32> to vector<16x512xf32>
    %93 = arith.mulf %90, %92 : vector<16x512xf32>
    %c497_i32_56 = arith.constant 497 : i32
    %94 = tpu.dynamic_rotate %73 by %c497_i32_56 dim 1 : vector<16x512xf32>, i32 -> vector<16x512xf32>
    %c6_57 = arith.constant 6 : index
    %c0_58 = arith.constant 0 : index
    %95 = vector.load %arg2[%c6_57, %c0_58] : memref<9x512xf32, #tpu.memory_space<vmem>>, vector<1x512xf32>
    %96 = vector.broadcast %95 : vector<1x512xf32> to vector<16x512xf32>
    %97 = arith.mulf %94, %96 : vector<16x512xf32>
    %c496_i32_59 = arith.constant 496 : i32
    %98 = tpu.dynamic_rotate %73 by %c496_i32_59 dim 1 : vector<16x512xf32>, i32 -> vector<16x512xf32>
    %c7_60 = arith.constant 7 : index
    %c0_61 = arith.constant 0 : index
    %99 = vector.load %arg2[%c7_60, %c0_61] : memref<9x512xf32, #tpu.memory_space<vmem>>, vector<1x512xf32>
    %100 = vector.broadcast %99 : vector<1x512xf32> to vector<16x512xf32>
    %101 = arith.mulf %98, %100 : vector<16x512xf32>
    %c495_i32_62 = arith.constant 495 : i32
    %102 = tpu.dynamic_rotate %73 by %c495_i32_62 dim 1 : vector<16x512xf32>, i32 -> vector<16x512xf32>
    %c8_63 = arith.constant 8 : index
    %c0_64 = arith.constant 0 : index
    %103 = vector.load %arg2[%c8_63, %c0_64] : memref<9x512xf32, #tpu.memory_space<vmem>>, vector<1x512xf32>
    %104 = vector.broadcast %103 : vector<1x512xf32> to vector<16x512xf32>
    %105 = arith.mulf %102, %104 : vector<16x512xf32>
    %106 = tpu.concatenate %77, %81, %85, %89, %73, %93, %97, %101, %105, %0 in 0 : vector<16x512xf32>, vector<16x512xf32>, vector<16x512xf32>, vector<16x512xf32>, vector<16x512xf32>, vector<16x512xf32>, vector<16x512xf32>, vector<16x512xf32>, vector<16x512xf32>, vector<8x512xf32> -> vector<152x512xf32>
    %c0_65 = arith.constant 0 : index
    %c0_66 = arith.constant 0 : index
    %107 = vector.load %arg5[%c0_65, %c0_66] : memref<8x152xf32, #tpu.memory_space<vmem>>, vector<8x152xf32>
    %cst_67 = arith.constant dense<0.000000e+00> : vector<8x512xf32>
    %108 = tpu.matmul %107, %106, %cst_67 {dimension_numbers = #tpu.dot_dimension_numbers<[1], [0], [0], [1], [0, 0, 1, 1], [], []>} : vector<8x152xf32>, vector<152x512xf32>, vector<8x512xf32> -> vector<8x512xf32>
    %cst_68 = arith.constant 0.000000e+00 : f32
    %109 = vector.broadcast %cst_68 : f32 to vector<8x512xf32>
    %110 = arith.maximumf %108, %109 : vector<8x512xf32>
    %c17_i32_69 = arith.constant 17 : i32
    %111 = tpu.dynamic_rotate %110 by %c17_i32_69 dim 1 : vector<8x512xf32>, i32 -> vector<8x512xf32>
    %c0_70 = arith.constant 0 : index
    %c0_71 = arith.constant 0 : index
    %112 = vector.load %arg2[%c0_70, %c0_71] : memref<9x512xf32, #tpu.memory_space<vmem>>, vector<1x512xf32>
    %113 = vector.broadcast %112 : vector<1x512xf32> to vector<8x512xf32>
    %114 = arith.mulf %111, %113 : vector<8x512xf32>
    %c16_i32_72 = arith.constant 16 : i32
    %115 = tpu.dynamic_rotate %110 by %c16_i32_72 dim 1 : vector<8x512xf32>, i32 -> vector<8x512xf32>
    %c1_73 = arith.constant 1 : index
    %c0_74 = arith.constant 0 : index
    %116 = vector.load %arg2[%c1_73, %c0_74] : memref<9x512xf32, #tpu.memory_space<vmem>>, vector<1x512xf32>
    %117 = vector.broadcast %116 : vector<1x512xf32> to vector<8x512xf32>
    %118 = arith.mulf %115, %117 : vector<8x512xf32>
    %c15_i32_75 = arith.constant 15 : i32
    %119 = tpu.dynamic_rotate %110 by %c15_i32_75 dim 1 : vector<8x512xf32>, i32 -> vector<8x512xf32>
    %c2_76 = arith.constant 2 : index
    %c0_77 = arith.constant 0 : index
    %120 = vector.load %arg2[%c2_76, %c0_77] : memref<9x512xf32, #tpu.memory_space<vmem>>, vector<1x512xf32>
    %121 = vector.broadcast %120 : vector<1x512xf32> to vector<8x512xf32>
    %122 = arith.mulf %119, %121 : vector<8x512xf32>
    %c1_i32_78 = arith.constant 1 : i32
    %123 = tpu.dynamic_rotate %110 by %c1_i32_78 dim 1 : vector<8x512xf32>, i32 -> vector<8x512xf32>
    %c3_79 = arith.constant 3 : index
    %c0_80 = arith.constant 0 : index
    %124 = vector.load %arg2[%c3_79, %c0_80] : memref<9x512xf32, #tpu.memory_space<vmem>>, vector<1x512xf32>
    %125 = vector.broadcast %124 : vector<1x512xf32> to vector<8x512xf32>
    %126 = arith.mulf %123, %125 : vector<8x512xf32>
    %c511_i32_81 = arith.constant 511 : i32
    %127 = tpu.dynamic_rotate %110 by %c511_i32_81 dim 1 : vector<8x512xf32>, i32 -> vector<8x512xf32>
    %c5_82 = arith.constant 5 : index
    %c0_83 = arith.constant 0 : index
    %128 = vector.load %arg2[%c5_82, %c0_83] : memref<9x512xf32, #tpu.memory_space<vmem>>, vector<1x512xf32>
    %129 = vector.broadcast %128 : vector<1x512xf32> to vector<8x512xf32>
    %130 = arith.mulf %127, %129 : vector<8x512xf32>
    %c497_i32_84 = arith.constant 497 : i32
    %131 = tpu.dynamic_rotate %110 by %c497_i32_84 dim 1 : vector<8x512xf32>, i32 -> vector<8x512xf32>
    %c6_85 = arith.constant 6 : index
    %c0_86 = arith.constant 0 : index
    %132 = vector.load %arg2[%c6_85, %c0_86] : memref<9x512xf32, #tpu.memory_space<vmem>>, vector<1x512xf32>
    %133 = vector.broadcast %132 : vector<1x512xf32> to vector<8x512xf32>
    %134 = arith.mulf %131, %133 : vector<8x512xf32>
    %c496_i32_87 = arith.constant 496 : i32
    %135 = tpu.dynamic_rotate %110 by %c496_i32_87 dim 1 : vector<8x512xf32>, i32 -> vector<8x512xf32>
    %c7_88 = arith.constant 7 : index
    %c0_89 = arith.constant 0 : index
    %136 = vector.load %arg2[%c7_88, %c0_89] : memref<9x512xf32, #tpu.memory_space<vmem>>, vector<1x512xf32>
    %137 = vector.broadcast %136 : vector<1x512xf32> to vector<8x512xf32>
    %138 = arith.mulf %135, %137 : vector<8x512xf32>
    %c495_i32_90 = arith.constant 495 : i32
    %139 = tpu.dynamic_rotate %110 by %c495_i32_90 dim 1 : vector<8x512xf32>, i32 -> vector<8x512xf32>
    %c8_91 = arith.constant 8 : index
    %c0_92 = arith.constant 0 : index
    %140 = vector.load %arg2[%c8_91, %c0_92] : memref<9x512xf32, #tpu.memory_space<vmem>>, vector<1x512xf32>
    %141 = vector.broadcast %140 : vector<1x512xf32> to vector<8x512xf32>
    %142 = arith.mulf %139, %141 : vector<8x512xf32>
    %143 = tpu.concatenate %114, %118, %122, %126, %110, %130, %134, %138, %142, %0 in 0 : vector<8x512xf32>, vector<8x512xf32>, vector<8x512xf32>, vector<8x512xf32>, vector<8x512xf32>, vector<8x512xf32>, vector<8x512xf32>, vector<8x512xf32>, vector<8x512xf32>, vector<8x512xf32> -> vector<80x512xf32>
    %c0_93 = arith.constant 0 : index
    %c0_94 = arith.constant 0 : index
    %144 = vector.load %arg6[%c0_93, %c0_94] : memref<8x80xf32, #tpu.memory_space<vmem>>, vector<8x80xf32>
    %cst_95 = arith.constant dense<0.000000e+00> : vector<8x512xf32>
    %145 = tpu.matmul %144, %143, %cst_95 {dimension_numbers = #tpu.dot_dimension_numbers<[1], [0], [0], [1], [0, 0, 1, 1], [], []>} : vector<8x80xf32>, vector<80x512xf32>, vector<8x512xf32> -> vector<8x512xf32>
    %146 = arith.negf %145 : vector<8x512xf32>
    %147 = math.exp %146 : vector<8x512xf32>
    %cst_96 = arith.constant 1.000000e+00 : f32
    %148 = vector.broadcast %cst_96 : f32 to vector<8x512xf32>
    %149 = arith.addf %148, %147 : vector<8x512xf32>
    %150 = arith.divf %148, %149 : vector<8x512xf32>
    %c0_97 = arith.constant 0 : index
    %c0_98 = arith.constant 0 : index
    %151 = vector.load %arg7[%c0_97, %c0_98] : memref<8x512xf32, #tpu.memory_space<vmem>>, vector<8x512xf32>
    tpu.vector_store %arg7[%c0_97, %c0_98], %150 {strides = array<i32>} : memref<8x512xf32, #tpu.memory_space<vmem>>, vector<8x512xf32>,
    return
  }
  func.func @transform_0(%arg0: i32) -> (i32, i32) {
    %c0_i32 = arith.constant 0 : i32
    %c0_i32_0 = arith.constant 0 : i32
    return %c0_i32, %arg0 : i32, i32
  }
  func.func @transform_1(%arg0: i32) -> (i32, i32) {
    %c0_i32 = arith.constant 0 : i32
    %c0_i32_0 = arith.constant 0 : i32
    %c0_i32_1 = arith.constant 0 : i32
    return %c0_i32, %c0_i32_0 : i32, i32
  }
  func.func @transform_2(%arg0: i32) -> (i32, i32) {
    %c0_i32 = arith.constant 0 : i32
    %c0_i32_0 = arith.constant 0 : i32
    %c0_i32_1 = arith.constant 0 : i32
    return %c0_i32, %c0_i32_0 : i32, i32
  }
  func.func @transform_3(%arg0: i32) -> (i32, i32) {
    %c0_i32 = arith.constant 0 : i32
    %c0_i32_0 = arith.constant 0 : i32
    %c0_i32_1 = arith.constant 0 : i32
    return %c0_i32, %c0_i32_0 : i32, i32
  }
  func.func @transform_4(%arg0: i32) -> (i32, i32) {
    %c0_i32 = arith.constant 0 : i32
    %c0_i32_0 = arith.constant 0 : i32
    %c0_i32_1 = arith.constant 0 : i32
    return %c0_i32, %c0_i32_0 : i32, i32
  }
  func.func @transform_5(%arg0: i32) -> (i32, i32) {
    %c0_i32 = arith.constant 0 : i32
    %c0_i32_0 = arith.constant 0 : i32
    %c0_i32_1 = arith.constant 0 : i32
    return %c0_i32, %c0_i32_0 : i32, i32
  }
  func.func @transform_6(%arg0: i32) -> (i32, i32) {
    %c0_i32 = arith.constant 0 : i32
    %c0_i32_0 = arith.constant 0 : i32
    return %c0_i32, %arg0 : i32, i32
  }
}

</mosaic_0001>

<llo_original>
// kernel: simple_autoencoder_forward.1
$region0: #{simple_autoencoder_forward.1}
  #allocation0 [shape = 'u32[]', space=smem, size = 0x4, offset = 0x4, fixed_abs, tag = 'smem constant byte address 0x4 - core index']
  #allocation1 [shape = 'u32[144,128]{1,0:T(1,128)}', space=vmem, size = 0x12000, scoped, tag = 'internal scratch']
  %s0 = inlined_call_operand.vmem [shape: f32[8,512], index: 0, kind: input, shape index: {}]
  %s1 = inlined_call_operand.vmem [shape: f32[9,512], index: 1, kind: input, shape index: {}]
  %s2 = inlined_call_operand.vmem [shape: f32[8,80], index: 2, kind: input, shape index: {}]
  %s3 = inlined_call_operand.vmem [shape: f32[16,80], index: 3, kind: input, shape index: {}]
  %s4 = inlined_call_operand.vmem [shape: f32[8,152], index: 4, kind: input, shape index: {}]
  %s5 = inlined_call_operand.vmem [shape: f32[8,80], index: 5, kind: input, shape index: {}]
  %s6 = inlined_call_operand.vmem [shape: f32[8,512], index: 6, kind: output, shape index: {}]
  %s7 = sld [smem:[#allocation0]]
  $region34: #{simple_autoencoder_forward.1} parent=0
    _
  %s9 = ssub.s32 1, %s7
  %s10 = scalar_select 0, %s9, %s7
  // Predicated region
  $region2: #{simple_autoencoder_forward.1} parent=0 // pred_check
    _
  $region3: #{simple_autoencoder_forward.1} parent=0 // pred_check_branch
    %12 = sbr.rel (0) target = $region5
  $region4: #{simple_autoencoder_forward.1} parent=0 // pred_region
    _
  $region5: #{simple_autoencoder_forward.1} parent=0 // pred_fallthru
    _
  // Predicated region
  $region6: #{simple_autoencoder_forward.1} parent=0 // pred_check
    _
  $region7: #{simple_autoencoder_forward.1} parent=0 // pred_check_branch
    %14 = sbr.rel (0) target = $region9
  $region8: #{simple_autoencoder_forward.1} parent=0 // pred_region
    _
  $region9: #{simple_autoencoder_forward.1} parent=0 // pred_fallthru
    _
  // Predicated region
  $region10: #{simple_autoencoder_forward.1} parent=0 // pred_check
    _
  $region11: #{simple_autoencoder_forward.1} parent=0 // pred_check_branch
    %16 = sbr.rel (0) target = $region13
  $region12: #{simple_autoencoder_forward.1} parent=0 // pred_region
    _
  $region13: #{simple_autoencoder_forward.1} parent=0 // pred_fallthru
    _
  // Predicated region
  $region14: #{simple_autoencoder_forward.1} parent=0 // pred_check
    _
  $region15: #{simple_autoencoder_forward.1} parent=0 // pred_check_branch
    %18 = sbr.rel (0) target = $region17
  $region16: #{simple_autoencoder_forward.1} parent=0 // pred_region
    _
  $region17: #{simple_autoencoder_forward.1} parent=0 // pred_fallthru
    _
  // Predicated region
  $region18: #{simple_autoencoder_forward.1} parent=0 // pred_check
    _
  $region19: #{simple_autoencoder_forward.1} parent=0 // pred_check_branch
    %20 = sbr.rel (0) target = $region21
  $region20: #{simple_autoencoder_forward.1} parent=0 // pred_region
    _
  $region21: #{simple_autoencoder_forward.1} parent=0 // pred_fallthru
    _
  // Predicated region
  $region22: #{simple_autoencoder_forward.1} parent=0 // pred_check
    _
  $region23: #{simple_autoencoder_forward.1} parent=0 // pred_check_branch
    %22 = sbr.rel (0) target = $region25
  $region24: #{simple_autoencoder_forward.1} parent=0 // pred_region
    _
  $region25: #{simple_autoencoder_forward.1} parent=0 // pred_fallthru
    _
  %v23 = vld [vmem:[%s0] sm:$0xff]
  %v24 = vld [vmem:[%s0 + $0x8] sm:$0xff]
  %v25 = vld [vmem:[%s0 + $0x10] sm:$0xff]
  %v26 = vld [vmem:[%s0 + $0x18] sm:$0xff]
  %27 = vrot.lane.b32.xlu0 %v23, 17
  %v28 = vpop.permute.xlu0 %27
  %29 = vrot.lane.b32.xlu0 %v24, 17
  %v30 = vpop.permute.xlu0 %29
  %31 = vrot.lane.b32.xlu0 %v25, 17
  %v32 = vpop.permute.xlu0 %31
  %33 = vrot.lane.b32.xlu0 %v26, 17
  %v34 = vpop.permute.xlu0 %33
  %v35 = vlaneseq
  %v36 = vand.u32 %v35, 127
  %vm37 = vcmp.lt.s32.totalorder %v36, 17
  %v38 = vsel %vm37, %v32, %v34
  %v39 = vsel %vm37, %v30, %v32
  %v40 = vsel %vm37, %v28, %v30
  %v41 = vsel %vm37, %v34, %v28
  %v42 = vld [vmem:[%s1] ss:$8 sm:$0xf]
  %v44 = vlaneseq
  %v45 = vshrl.u32 %v44, 7
  %v46 = vsub.s32 0, %v45
  %v47 = vrot.slane %v42, %v46
  %v48 = vlaneseq
  %v49 = vshrl.u32 %v48, 7
  %v50 = vsub.s32 1, %v49
  %v51 = vrot.slane %v42, %v50
  %v52 = vlaneseq
  %v53 = vshrl.u32 %v52, 7
  %v54 = vsub.s32 2, %v53
  %v55 = vrot.slane %v42, %v54
  %v56 = vlaneseq
  %v57 = vshrl.u32 %v56, 7
  %v58 = vsub.s32 3, %v57
  %v59 = vrot.slane %v42, %v58
  %v64 = vmul.f32 %v41, %v47
  %v65 = vmul.f32 %v40, %v51
  %v66 = vmul.f32 %v39, %v55
  %v67 = vmul.f32 %v38, %v59
  %68 = vrot.lane.b32.xlu0 %v23, 16
  %v69 = vpop.permute.xlu0 %68
  %70 = vrot.lane.b32.xlu0 %v24, 16
  %v71 = vpop.permute.xlu0 %70
  %72 = vrot.lane.b32.xlu0 %v25, 16
  %v73 = vpop.permute.xlu0 %72
  %74 = vrot.lane.b32.xlu0 %v26, 16
  %v75 = vpop.permute.xlu0 %74
  %vm76 = vcmp.lt.s32.totalorder %v36, 16
  %v77 = vsel %vm76, %v73, %v75
  %v78 = vsel %vm76, %v71, %v73
  %v79 = vsel %vm76, %v69, %v71
  %v80 = vsel %vm76, %v75, %v69
  %s81 = scalar_lea.vmem %s1, 1
  %v82 = vld [vmem:[%s81] ss:$8 sm:$0xf]
  %v84 = vlaneseq
  %v85 = vshrl.u32 %v84, 7
  %v86 = vsub.s32 0, %v85
  %v87 = vrot.slane %v82, %v86
  %v88 = vlaneseq
  %v89 = vshrl.u32 %v88, 7
  %v90 = vsub.s32 1, %v89
  %v91 = vrot.slane %v82, %v90
  %v92 = vlaneseq
  %v93 = vshrl.u32 %v92, 7
  %v94 = vsub.s32 2, %v93
  %v95 = vrot.slane %v82, %v94
  %v96 = vlaneseq
  %v97 = vshrl.u32 %v96, 7
  %v98 = vsub.s32 3, %v97
  %v99 = vrot.slane %v82, %v98
  %v104 = vmul.f32 %v80, %v87
  %v105 = vmul.f32 %v79, %v91
  %v106 = vmul.f32 %v78, %v95
  %v107 = vmul.f32 %v77, %v99
  %108 = vrot.lane.b32.xlu0 %v23, 15
  %v109 = vpop.permute.xlu0 %108
  %110 = vrot.lane.b32.xlu0 %v24, 15
  %v111 = vpop.permute.xlu0 %110
  %112 = vrot.lane.b32.xlu0 %v25, 15
  %v113 = vpop.permute.xlu0 %112
  %114 = vrot.lane.b32.xlu0 %v26, 15
  %v115 = vpop.permute.xlu0 %114
  %vm116 = vcmp.lt.s32.totalorder %v36, 15
  %v117 = vsel %vm116, %v113, %v115
  %v118 = vsel %vm116, %v111, %v113
  %v119 = vsel %vm116, %v109, %v111
  %v120 = vsel %vm116, %v115, %v109
  %s121 = scalar_lea.vmem %s1, 2
  %v122 = vld [vmem:[%s121] ss:$8 sm:$0xf]
  %v124 = vlaneseq
  %v125 = vshrl.u32 %v124, 7
  %v126 = vsub.s32 0, %v125
  %v127 = vrot.slane %v122, %v126
  %v128 = vlaneseq
  %v129 = vshrl.u32 %v128, 7
  %v130 = vsub.s32 1, %v129
  %v131 = vrot.slane %v122, %v130
  %v132 = vlaneseq
  %v133 = vshrl.u32 %v132, 7
  %v134 = vsub.s32 2, %v133
  %v135 = vrot.slane %v122, %v134
  %v136 = vlaneseq
  %v137 = vshrl.u32 %v136, 7
  %v138 = vsub.s32 3, %v137
  %v139 = vrot.slane %v122, %v138
  %v144 = vmul.f32 %v120, %v127
  %v145 = vmul.f32 %v119, %v131
  %v146 = vmul.f32 %v118, %v135
  %v147 = vmul.f32 %v117, %v139
  %148 = vrot.lane.b32.xlu0 %v23, 1
  %v149 = vpop.permute.xlu0 %148
  %150 = vrot.lane.b32.xlu0 %v24, 1
  %v151 = vpop.permute.xlu0 %150
  %152 = vrot.lane.b32.xlu0 %v25, 1
  %v153 = vpop.permute.xlu0 %152
  %154 = vrot.lane.b32.xlu0 %v26, 1
  %v155 = vpop.permute.xlu0 %154
  %vm156 = vcmp.lt.s32.totalorder %v36, 1
  %v157 = vsel %vm156, %v153, %v155
  %v158 = vsel %vm156, %v151, %v153
  %v159 = vsel %vm156, %v149, %v151
  %v160 = vsel %vm156, %v155, %v149
  %s161 = scalar_lea.vmem %s1, 3
  %v162 = vld [vmem:[%s161] ss:$8 sm:$0xf]
  %v164 = vlaneseq
  %v165 = vshrl.u32 %v164, 7
  %v166 = vsub.s32 0, %v165
  %v167 = vrot.slane %v162, %v166
  %v168 = vlaneseq
  %v169 = vshrl.u32 %v168, 7
  %v170 = vsub.s32 1, %v169
  %v171 = vrot.slane %v162, %v170
  %v172 = vlaneseq
  %v173 = vshrl.u32 %v172, 7
  %v174 = vsub.s32 2, %v173
  %v175 = vrot.slane %v162, %v174
  %v176 = vlaneseq
  %v177 = vshrl.u32 %v176, 7
  %v178 = vsub.s32 3, %v177
  %v179 = vrot.slane %v162, %v178
  %v184 = vmul.f32 %v160, %v167
  %v185 = vmul.f32 %v159, %v171
  %v186 = vmul.f32 %v158, %v175
  %v187 = vmul.f32 %v157, %v179
  %188 = vrot.lane.b32.xlu0 %v23, 127
  %v189 = vpop.permute.xlu0 %188
  %190 = vrot.lane.b32.xlu0 %v24, 127
  %v191 = vpop.permute.xlu0 %190
  %192 = vrot.lane.b32.xlu0 %v25, 127
  %v193 = vpop.permute.xlu0 %192
  %194 = vrot.lane.b32.xlu0 %v26, 127
  %v195 = vpop.permute.xlu0 %194
  %vm196 = vcmp.lt.s32.totalorder %v36, 127
  %v197 = vsel %vm196, %v193, %v195
  %v198 = vsel %vm196, %v191, %v193
  %v199 = vsel %vm196, %v189, %v191
  %v200 = vsel %vm196, %v195, %v189
  %s201 = scalar_lea.vmem %s1, 5
  %v202 = vld [vmem:[%s201] ss:$8 sm:$0xf]
  %v204 = vlaneseq
  %v205 = vshrl.u32 %v204, 7
  %v206 = vsub.s32 0, %v205
  %v207 = vrot.slane %v202, %v206
  %v208 = vlaneseq
  %v209 = vshrl.u32 %v208, 7
  %v210 = vsub.s32 1, %v209
  %v211 = vrot.slane %v202, %v210
  %v212 = vlaneseq
  %v213 = vshrl.u32 %v212, 7
  %v214 = vsub.s32 2, %v213
  %v215 = vrot.slane %v202, %v214
  %v216 = vlaneseq
  %v217 = vshrl.u32 %v216, 7
  %v218 = vsub.s32 3, %v217
  %v219 = vrot.slane %v202, %v218
  %v224 = vmul.f32 %v199, %v207
  %v225 = vmul.f32 %v198, %v211
  %v226 = vmul.f32 %v197, %v215
  %v227 = vmul.f32 %v200, %v219
  %228 = vrot.lane.b32.xlu0 %v23, 113
  %v229 = vpop.permute.xlu0 %228
  %230 = vrot.lane.b32.xlu0 %v24, 113
  %v231 = vpop.permute.xlu0 %230
  %232 = vrot.lane.b32.xlu0 %v25, 113
  %v233 = vpop.permute.xlu0 %232
  %234 = vrot.lane.b32.xlu0 %v26, 113
  %v235 = vpop.permute.xlu0 %234
  %vm236 = vcmp.lt.s32.totalorder %v36, 113
  %v237 = vsel %vm236, %v233, %v235
  %v238 = vsel %vm236, %v231, %v233
  %v239 = vsel %vm236, %v229, %v231
  %v240 = vsel %vm236, %v235, %v229
  %s241 = scalar_lea.vmem %s1, 6
  %v242 = vld [vmem:[%s241] ss:$8 sm:$0xf]
  %v244 = vlaneseq
  %v245 = vshrl.u32 %v244, 7
  %v246 = vsub.s32 0, %v245
  %v247 = vrot.slane %v242, %v246
  %v248 = vlaneseq
  %v249 = vshrl.u32 %v248, 7
  %v250 = vsub.s32 1, %v249
  %v251 = vrot.slane %v242, %v250
  %v252 = vlaneseq
  %v253 = vshrl.u32 %v252, 7
  %v254 = vsub.s32 2, %v253
  %v255 = vrot.slane %v242, %v254
  %v256 = vlaneseq
  %v257 = vshrl.u32 %v256, 7
  %v258 = vsub.s32 3, %v257
  %v259 = vrot.slane %v242, %v258
  %v264 = vmul.f32 %v239, %v247
  %v265 = vmul.f32 %v238, %v251
  %v266 = vmul.f32 %v237, %v255
  %v267 = vmul.f32 %v240, %v259
  %268 = vrot.lane.b32.xlu0 %v23, 112
  %v269 = vpop.permute.xlu0 %268
  %270 = vrot.lane.b32.xlu0 %v24, 112
  %v271 = vpop.permute.xlu0 %270
  %272 = vrot.lane.b32.xlu0 %v25, 112
  %v273 = vpop.permute.xlu0 %272
  %274 = vrot.lane.b32.xlu0 %v26, 112
  %v275 = vpop.permute.xlu0 %274
  %vm276 = vcmp.lt.s32.totalorder %v36, 112
  %v277 = vsel %vm276, %v273, %v275
  %v278 = vsel %vm276, %v271, %v273
  %v279 = vsel %vm276, %v269, %v271
  %v280 = vsel %vm276, %v275, %v269
  %s281 = scalar_lea.vmem %s1, 7
  %v282 = vld [vmem:[%s281] ss:$8 sm:$0xf]
  %v284 = vlaneseq
  %v285 = vshrl.u32 %v284, 7
  %v286 = vsub.s32 0, %v285
  %v287 = vrot.slane %v282, %v286
  %v288 = vlaneseq
  %v289 = vshrl.u32 %v288, 7
  %v290 = vsub.s32 1, %v289
  %v291 = vrot.slane %v282, %v290
  %v292 = vlaneseq
  %v293 = vshrl.u32 %v292, 7
  %v294 = vsub.s32 2, %v293
  %v295 = vrot.slane %v282, %v294
  %v296 = vlaneseq
  %v297 = vshrl.u32 %v296, 7
  %v298 = vsub.s32 3, %v297
  %v299 = vrot.slane %v282, %v298
  %v304 = vmul.f32 %v279, %v287
  %v305 = vmul.f32 %v278, %v291
  %v306 = vmul.f32 %v277, %v295
  %v307 = vmul.f32 %v280, %v299
  %308 = vrot.lane.b32.xlu0 %v23, 111
  %v309 = vpop.permute.xlu0 %308
  %310 = vrot.lane.b32.xlu0 %v24, 111
  %v311 = vpop.permute.xlu0 %310
  %312 = vrot.lane.b32.xlu0 %v25, 111
  %v313 = vpop.permute.xlu0 %312
  %314 = vrot.lane.b32.xlu0 %v26, 111
  %v315 = vpop.permute.xlu0 %314
  %vm316 = vcmp.lt.s32.totalorder %v36, 111
  %v317 = vsel %vm316, %v313, %v315
  %v318 = vsel %vm316, %v311, %v313
  %v319 = vsel %vm316, %v309, %v311
  %v320 = vsel %vm316, %v315, %v309
  %s321 = scalar_lea.vmem %s1, 32
  %v322 = vld [vmem:[%s321] ss:$8 sm:$0xf]
  %v324 = vlaneseq
  %v325 = vshrl.u32 %v324, 7
  %v326 = vsub.s32 0, %v325
  %v327 = vrot.slane %v322, %v326
  %v328 = vlaneseq
  %v329 = vshrl.u32 %v328, 7
  %v330 = vsub.s32 1, %v329
  %v331 = vrot.slane %v322, %v330
  %v332 = vlaneseq
  %v333 = vshrl.u32 %v332, 7
  %v334 = vsub.s32 2, %v333
  %v335 = vrot.slane %v322, %v334
  %v336 = vlaneseq
  %v337 = vshrl.u32 %v336, 7
  %v338 = vsub.s32 3, %v337
  %v339 = vrot.slane %v322, %v338
  %v344 = vmul.f32 %v319, %v327
  %v345 = vmul.f32 %v318, %v331
  %v346 = vmul.f32 %v317, %v335
  %v347 = vmul.f32 %v320, %v339
  %v348 = vld [vmem:[%s2] sm:$0xff]
  %vm349 = vcmask 654336
  %v351 = vsel %vm349, %v348, 0
  %353 = vmatprep.subr.mxu0 0.0
  %354 = vmatpush1.msra.mxu0 0.0
  %355 = vmatprep.subr.mxu0 0.0
  %356 = vmatpush1.msra.mxu0 0.0
  %357 = vmatprep.subr.mxu0 0.0
  %358 = vmatpush1.msra.mxu0 0.0
  %359 = vmatprep.subr.mxu0 0.0
  %360 = vmatpush1.msra.mxu0 0.0
  %361 = vmatprep.subr.mxu0 0.0
  %362 = vmatpush1.msra.mxu0 0.0
  %363 = vmatprep.subr.mxu0 0.0
  %364 = vmatpush1.msra.mxu0 0.0
  %365 = vmatprep.subr.mxu0 1.0
  %366 = vmatpush1.msra.mxu0 1.0
  %367 = vmatprep.subr.mxu0 %v345
  %368 = vmatpush1.msra.mxu0 %v344
  %369 = vmatprep.subr.mxu0 %v305
  %370 = vmatpush1.msra.mxu0 %v304
  %371 = vmatprep.subr.mxu0 %v265
  %372 = vmatpush1.msra.mxu0 %v264
  %373 = vmatprep.subr.mxu0 %v225
  %374 = vmatpush1.msra.mxu0 %v224
  %375 = vmatprep.subr.mxu0 %v24
  %376 = vmatpush1.msra.mxu0 %v23
  %377 = vmatprep.subr.mxu0 %v185
  %378 = vmatpush1.msra.mxu0 %v184
  %379 = vmatprep.subr.mxu0 %v145
  %380 = vmatpush1.msra.mxu0 %v144
  %381 = vmatprep.subr.mxu0 %v105
  %382 = vmatpush1.msra.mxu0 %v104
  %383 = vmatprep.subr.mxu0 %v65
  %384 = vmatpush1.msra.mxu0 %v64
  %385 = vmatprep.subr.mxu0 0.0
  %386 = vmatpush2.msra.mxu0 0.0
  %387 = vmatprep.subr.mxu0 0.0
  %388 = vmatpush2.msra.mxu0 0.0
  %389 = vmatprep.subr.mxu0 0.0
  %390 = vmatpush2.msra.mxu0 0.0
  %391 = vmatprep.subr.mxu0 0.0
  %392 = vmatpush2.msra.mxu0 0.0
  %393 = vmatprep.subr.mxu0 0.0
  %394 = vmatpush2.msra.mxu0 0.0
  %395 = vmatprep.subr.mxu0 0.0
  %396 = vmatpush2.msra.mxu0 0.0
  %397 = vmatprep.subr.mxu0 0.0
  %398 = vmatpush2.msra.mxu0 0.0
  %399 = vmatprep.subr.mxu0 0.0
  %400 = vmatpush2.msra.mxu0 0.0
  %401 = vmatprep.subr.mxu0 0.0
  %402 = vmatpush2.msra.mxu0 0.0
  %403 = vmatprep.subr.mxu0 0.0
  %404 = vmatpush2.msra.mxu0 0.0
  %405 = vmatprep.subr.mxu0 0.0
  %406 = vmatpush2.msra.mxu0 0.0
  %407 = vmatprep.subr.mxu0 0.0
  %408 = vmatpush2.msra.mxu0 0.0
  %409 = vmatprep.subr.mxu0 0.0
  %410 = vmatpush2.msra.mxu0 0.0
  %411 = vmatprep.subr.mxu0 0.0
  %412 = vmatpush2.msra.mxu0 0.0
  %413 = vmatprep.subr.mxu0 0.0
  %414 = vmatpush2.msra.mxu0 0.0
  %415 = vmatprep.subr.mxu0 0.0
  %416 = vmatpush2.msra.mxu0 0.0
  %417 = vmatprep.mubr.f32.mxu0 0.0
  %418 = vmatmul.mubr.f32.gmra.mxu0 %v351
  %v419 = vpop.f32.mrf.mxu0
  %v420 = vadd.f32 0.0, %v419
  %v421 = vpop.f32.mrf.mxu0
  %v422 = vadd.f32 0.0, %v421
  %423 = vdwg.mxu0
  %424 = vmatprep.subr.mxu0 0.0
  %425 = vmatpush1.msra.mxu0 0.0
  %426 = vmatprep.subr.mxu0 0.0
  %427 = vmatpush1.msra.mxu0 0.0
  %428 = vmatprep.subr.mxu0 0.0
  %429 = vmatpush1.msra.mxu0 0.0
  %430 = vmatprep.subr.mxu0 0.0
  %431 = vmatpush1.msra.mxu0 0.0
  %432 = vmatprep.subr.mxu0 0.0
  %433 = vmatpush1.msra.mxu0 0.0
  %434 = vmatprep.subr.mxu0 0.0
  %435 = vmatpush1.msra.mxu0 0.0
  %436 = vmatprep.subr.mxu0 1.0
  %437 = vmatpush1.msra.mxu0 1.0
  %438 = vmatprep.subr.mxu0 %v347
  %439 = vmatpush1.msra.mxu0 %v346
  %440 = vmatprep.subr.mxu0 %v307
  %441 = vmatpush1.msra.mxu0 %v306
  %442 = vmatprep.subr.mxu0 %v267
  %443 = vmatpush1.msra.mxu0 %v266
  %444 = vmatprep.subr.mxu0 %v227
  %445 = vmatpush1.msra.mxu0 %v226
  %446 = vmatprep.subr.mxu0 %v26
  %447 = vmatpush1.msra.mxu0 %v25
  %448 = vmatprep.subr.mxu0 %v187
  %449 = vmatpush1.msra.mxu0 %v186
  %450 = vmatprep.subr.mxu0 %v147
  %451 = vmatpush1.msra.mxu0 %v146
  %452 = vmatprep.subr.mxu0 %v107
  %453 = vmatpush1.msra.mxu0 %v106
  %454 = vmatprep.subr.mxu0 %v67
  %455 = vmatpush1.msra.mxu0 %v66
  %456 = vmatprep.subr.mxu0 0.0
  %457 = vmatpush2.msra.mxu0 0.0
  %458 = vmatprep.subr.mxu0 0.0
  %459 = vmatpush2.msra.mxu0 0.0
  %460 = vmatprep.subr.mxu0 0.0
  %461 = vmatpush2.msra.mxu0 0.0
  %462 = vmatprep.subr.mxu0 0.0
  %463 = vmatpush2.msra.mxu0 0.0
  %464 = vmatprep.subr.mxu0 0.0
  %465 = vmatpush2.msra.mxu0 0.0
  %466 = vmatprep.subr.mxu0 0.0
  %467 = vmatpush2.msra.mxu0 0.0
  %468 = vmatprep.subr.mxu0 0.0
  %469 = vmatpush2.msra.mxu0 0.0
  %470 = vmatprep.subr.mxu0 0.0
  %471 = vmatpush2.msra.mxu0 0.0
  %472 = vmatprep.subr.mxu0 0.0
  %473 = vmatpush2.msra.mxu0 0.0
  %474 = vmatprep.subr.mxu0 0.0
  %475 = vmatpush2.msra.mxu0 0.0
  %476 = vmatprep.subr.mxu0 0.0
  %477 = vmatpush2.msra.mxu0 0.0
  %478 = vmatprep.subr.mxu0 0.0
  %479 = vmatpush2.msra.mxu0 0.0
  %480 = vmatprep.subr.mxu0 0.0
  %481 = vmatpush2.msra.mxu0 0.0
  %482 = vmatprep.subr.mxu0 0.0
  %483 = vmatpush2.msra.mxu0 0.0
  %484 = vmatprep.subr.mxu0 0.0
  %485 = vmatpush2.msra.mxu0 0.0
  %486 = vmatprep.subr.mxu0 0.0
  %487 = vmatpush2.msra.mxu0 0.0
  %488 = vmatprep.mubr.f32.mxu0 0.0
  %489 = vmatmul.mubr.f32.gmra.mxu0 %v351
  %v490 = vpop.f32.mrf.mxu0
  %v491 = vadd.f32 0.0, %v490
  %v492 = vpop.f32.mrf.mxu0
  %v493 = vadd.f32 0.0, %v492
  %494 = vdwg.mxu0
  %v495 = vmax.f32 %v420, 0.0
  %v496 = vmax.f32 %v422, 0.0
  %v497 = vmax.f32 %v491, 0.0
  %v498 = vmax.f32 %v493, 0.0
  %499 = vrot.lane.b32.xlu0 %v495, 17
  %v500 = vpop.permute.xlu0 %499
  %501 = vrot.lane.b32.xlu0 %v496, 17
  %v502 = vpop.permute.xlu0 %501
  %503 = vrot.lane.b32.xlu0 %v497, 17
  %v504 = vpop.permute.xlu0 %503
  %505 = vrot.lane.b32.xlu0 %v498, 17
  %v506 = vpop.permute.xlu0 %505
  %v507 = vsel %vm37, %v504, %v506
  %v508 = vsel %vm37, %v502, %v504
  %v509 = vsel %vm37, %v500, %v502
  %v510 = vsel %vm37, %v506, %v500
  %v511 = vmul.f32 %v510, %v47
  %v512 = vmul.f32 %v509, %v51
  %v513 = vmul.f32 %v508, %v55
  %v514 = vmul.f32 %v507, %v59
  %515 = vrot.lane.b32.xlu0 %v495, 16
  %v516 = vpop.permute.xlu0 %515
  %517 = vrot.lane.b32.xlu0 %v496, 16
  %v518 = vpop.permute.xlu0 %517
  %519 = vrot.lane.b32.xlu0 %v497, 16
  %v520 = vpop.permute.xlu0 %519
  %521 = vrot.lane.b32.xlu0 %v498, 16
  %v522 = vpop.permute.xlu0 %521
  %v523 = vsel %vm76, %v520, %v522
  %v524 = vsel %vm76, %v518, %v520
  %v525 = vsel %vm76, %v516, %v518
  %v526 = vsel %vm76, %v522, %v516
  %v527 = vmul.f32 %v526, %v87
  %v528 = vmul.f32 %v525, %v91
  %v529 = vmul.f32 %v524, %v95
  %v530 = vmul.f32 %v523, %v99
  %531 = vrot.lane.b32.xlu0 %v495, 15
  %v532 = vpop.permute.xlu0 %531
  %533 = vrot.lane.b32.xlu0 %v496, 15
  %v534 = vpop.permute.xlu0 %533
  %535 = vrot.lane.b32.xlu0 %v497, 15
  %v536 = vpop.permute.xlu0 %535
  %537 = vrot.lane.b32.xlu0 %v498, 15
  %v538 = vpop.permute.xlu0 %537
  %v539 = vsel %vm116, %v536, %v538
  %v540 = vsel %vm116, %v534, %v536
  %v541 = vsel %vm116, %v532, %v534
  %v542 = vsel %vm116, %v538, %v532
  %v543 = vmul.f32 %v542, %v127
  %v544 = vmul.f32 %v541, %v131
  %v545 = vmul.f32 %v540, %v135
  %v546 = vmul.f32 %v539, %v139
  %547 = vrot.lane.b32.xlu0 %v495, 1
  %v548 = vpop.permute.xlu0 %547
  %549 = vrot.lane.b32.xlu0 %v496, 1
  %v550 = vpop.permute.xlu0 %549
  %551 = vrot.lane.b32.xlu0 %v497, 1
  %v552 = vpop.permute.xlu0 %551
  %553 = vrot.lane.b32.xlu0 %v498, 1
  %v554 = vpop.permute.xlu0 %553
  %v555 = vsel %vm156, %v552, %v554
  %v556 = vsel %vm156, %v550, %v552
  %v557 = vsel %vm156, %v548, %v550
  %v558 = vsel %vm156, %v554, %v548
  %v559 = vmul.f32 %v558, %v167
  %v560 = vmul.f32 %v557, %v171
  %v561 = vmul.f32 %v556, %v175
  %v562 = vmul.f32 %v555, %v179
  %563 = vrot.lane.b32.xlu0 %v495, 127
  %v564 = vpop.permute.xlu0 %563
  %565 = vrot.lane.b32.xlu0 %v496, 127
  %v566 = vpop.permute.xlu0 %565
  %567 = vrot.lane.b32.xlu0 %v497, 127
  %v568 = vpop.permute.xlu0 %567
  %569 = vrot.lane.b32.xlu0 %v498, 127
  %v570 = vpop.permute.xlu0 %569
  %v571 = vsel %vm196, %v568, %v570
  %v572 = vsel %vm196, %v566, %v568
  %v573 = vsel %vm196, %v564, %v566
  %v574 = vsel %vm196, %v570, %v564
  %v575 = vmul.f32 %v573, %v207
  %v576 = vmul.f32 %v572, %v211
  %v577 = vmul.f32 %v571, %v215
  %v578 = vmul.f32 %v574, %v219
  %579 = vrot.lane.b32.xlu0 %v495, 113
  %v580 = vpop.permute.xlu0 %579
  %581 = vrot.lane.b32.xlu0 %v496, 113
  %v582 = vpop.permute.xlu0 %581
  %583 = vrot.lane.b32.xlu0 %v497, 113
  %v584 = vpop.permute.xlu0 %583
  %585 = vrot.lane.b32.xlu0 %v498, 113
  %v586 = vpop.permute.xlu0 %585
  %v587 = vsel %vm236, %v584, %v586
  %v588 = vsel %vm236, %v582, %v584
  %v589 = vsel %vm236, %v580, %v582
  %v590 = vsel %vm236, %v586, %v580
  %v591 = vmul.f32 %v589, %v247
  %v592 = vmul.f32 %v588, %v251
  %v593 = vmul.f32 %v587, %v255
  %v594 = vmul.f32 %v590, %v259
  %595 = vrot.lane.b32.xlu0 %v495, 112
  %v596 = vpop.permute.xlu0 %595
  %597 = vrot.lane.b32.xlu0 %v496, 112
  %v598 = vpop.permute.xlu0 %597
  %599 = vrot.lane.b32.xlu0 %v497, 112
  %v600 = vpop.permute.xlu0 %599
  %601 = vrot.lane.b32.xlu0 %v498, 112
  %v602 = vpop.permute.xlu0 %601
  %v603 = vsel %vm276, %v600, %v602
  %v604 = vsel %vm276, %v598, %v600
  %v605 = vsel %vm276, %v596, %v598
  %v606 = vsel %vm276, %v602, %v596
  %v607 = vmul.f32 %v605, %v287
  %v608 = vmul.f32 %v604, %v291
  %v609 = vmul.f32 %v603, %v295
  %v610 = vmul.f32 %v606, %v299
  %611 = vrot.lane.b32.xlu0 %v495, 111
  %v612 = vpop.permute.xlu0 %611
  %613 = vrot.lane.b32.xlu0 %v496, 111
  %v614 = vpop.permute.xlu0 %613
  %615 = vrot.lane.b32.xlu0 %v497, 111
  %v616 = vpop.permute.xlu0 %615
  %617 = vrot.lane.b32.xlu0 %v498, 111
  %v618 = vpop.permute.xlu0 %617
  %v619 = vsel %vm316, %v616, %v618
  %v620 = vsel %vm316, %v614, %v616
  %v621 = vsel %vm316, %v612, %v614
  %v622 = vsel %vm316, %v618, %v612
  %v623 = vmul.f32 %v621, %v327
  %v624 = vmul.f32 %v620, %v331
  %v625 = vmul.f32 %v619, %v335
  %v626 = vmul.f32 %v622, %v339
  %v627 = vld [vmem:[%s3] sm:$0xff]
  %v628 = vld [vmem:[%s3 + $0x8] sm:$0xff]
  %v630 = vsel %vm349, %v627, 0
  %v633 = vsel %vm349, %v628, 0
  %635 = vmatprep.subr.mxu0 0.0
  %636 = vmatpush1.msra.mxu0 0.0
  %637 = vmatprep.subr.mxu0 0.0
  %638 = vmatpush1.msra.mxu0 0.0
  %639 = vmatprep.subr.mxu0 0.0
  %640 = vmatpush1.msra.mxu0 0.0
  %641 = vmatprep.subr.mxu0 0.0
  %642 = vmatpush1.msra.mxu0 0.0
  %643 = vmatprep.subr.mxu0 0.0
  %644 = vmatpush1.msra.mxu0 0.0
  %645 = vmatprep.subr.mxu0 0.0
  %646 = vmatpush1.msra.mxu0 0.0
  %647 = vmatprep.subr.mxu0 1.0
  %648 = vmatpush1.msra.mxu0 1.0
  %649 = vmatprep.subr.mxu0 %v624
  %650 = vmatpush1.msra.mxu0 %v623
  %651 = vmatprep.subr.mxu0 %v608
  %652 = vmatpush1.msra.mxu0 %v607
  %653 = vmatprep.subr.mxu0 %v592
  %654 = vmatpush1.msra.mxu0 %v591
  %655 = vmatprep.subr.mxu0 %v576
  %656 = vmatpush1.msra.mxu0 %v575
  %657 = vmatprep.subr.mxu0 %v496
  %658 = vmatpush1.msra.mxu0 %v495
  %659 = vmatprep.subr.mxu0 %v560
  %660 = vmatpush1.msra.mxu0 %v559
  %661 = vmatprep.subr.mxu0 %v544
  %662 = vmatpush1.msra.mxu0 %v543
  %663 = vmatprep.subr.mxu0 %v528
  %664 = vmatpush1.msra.mxu0 %v527
  %665 = vmatprep.subr.mxu0 %v512
  %666 = vmatpush1.msra.mxu0 %v511
  %667 = vmatprep.subr.mxu0 0.0
  %668 = vmatpush2.msra.mxu0 0.0
  %669 = vmatprep.subr.mxu0 0.0
  %670 = vmatpush2.msra.mxu0 0.0
  %671 = vmatprep.subr.mxu0 0.0
  %672 = vmatpush2.msra.mxu0 0.0
  %673 = vmatprep.subr.mxu0 0.0
  %674 = vmatpush2.msra.mxu0 0.0
  %675 = vmatprep.subr.mxu0 0.0
  %676 = vmatpush2.msra.mxu0 0.0
  %677 = vmatprep.subr.mxu0 0.0
  %678 = vmatpush2.msra.mxu0 0.0
  %679 = vmatprep.subr.mxu0 0.0
  %680 = vmatpush2.msra.mxu0 0.0
  %681 = vmatprep.subr.mxu0 0.0
  %682 = vmatpush2.msra.mxu0 0.0
  %683 = vmatprep.subr.mxu0 0.0
  %684 = vmatpush2.msra.mxu0 0.0
  %685 = vmatprep.subr.mxu0 0.0
  %686 = vmatpush2.msra.mxu0 0.0
  %687 = vmatprep.subr.mxu0 0.0
  %688 = vmatpush2.msra.mxu0 0.0
  %689 = vmatprep.subr.mxu0 0.0
  %690 = vmatpush2.msra.mxu0 0.0
  %691 = vmatprep.subr.mxu0 0.0
  %692 = vmatpush2.msra.mxu0 0.0
  %693 = vmatprep.subr.mxu0 0.0
  %694 = vmatpush2.msra.mxu0 0.0
  %695 = vmatprep.subr.mxu0 0.0
  %696 = vmatpush2.msra.mxu0 0.0
  %697 = vmatprep.subr.mxu0 0.0
  %698 = vmatpush2.msra.mxu0 0.0
  %699 = vmatprep.mubr.f32.mxu0 0.0
  %700 = vmatmul.mubr.f32.gmra.mxu0 %v630
  %v701 = vpop.f32.mrf.mxu0
  %v702 = vadd.f32 0.0, %v701
  %v703 = vpop.f32.mrf.mxu0
  %v704 = vadd.f32 0.0, %v703
  %705 = vmatprep.mubr.f32.mxu0 0.0
  %706 = vmatmul.mubr.f32.gmra.mxu0 %v633
  %v707 = vpop.f32.mrf.mxu0
  %v708 = vadd.f32 0.0, %v707
  %v709 = vpop.f32.mrf.mxu0
  %v710 = vadd.f32 0.0, %v709
  %711 = vdwg.mxu0
  %712 = vmatprep.subr.mxu0 0.0
  %713 = vmatpush1.msra.mxu0 0.0
  %714 = vmatprep.subr.mxu0 0.0
  %715 = vmatpush1.msra.mxu0 0.0
  %716 = vmatprep.subr.mxu0 0.0
  %717 = vmatpush1.msra.mxu0 0.0
  %718 = vmatprep.subr.mxu0 0.0
  %719 = vmatpush1.msra.mxu0 0.0
  %720 = vmatprep.subr.mxu0 0.0
  %721 = vmatpush1.msra.mxu0 0.0
  %722 = vmatprep.subr.mxu0 0.0
  %723 = vmatpush1.msra.mxu0 0.0
  %724 = vmatprep.subr.mxu0 1.0
  %725 = vmatpush1.msra.mxu0 1.0
  %726 = vmatprep.subr.mxu0 %v626
  %727 = vmatpush1.msra.mxu0 %v625
  %728 = vmatprep.subr.mxu0 %v610
  %729 = vmatpush1.msra.mxu0 %v609
  %730 = vmatprep.subr.mxu0 %v594
  %731 = vmatpush1.msra.mxu0 %v593
  %732 = vmatprep.subr.mxu0 %v578
  %733 = vmatpush1.msra.mxu0 %v577
  %734 = vmatprep.subr.mxu0 %v498
  %735 = vmatpush1.msra.mxu0 %v497
  %736 = vmatprep.subr.mxu0 %v562
  %737 = vmatpush1.msra.mxu0 %v561
  %738 = vmatprep.subr.mxu0 %v546
  %739 = vmatpush1.msra.mxu0 %v545
  %740 = vmatprep.subr.mxu0 %v530
  %741 = vmatpush1.msra.mxu0 %v529
  %742 = vmatprep.subr.mxu0 %v514
  %743 = vmatpush1.msra.mxu0 %v513
  %744 = vmatprep.subr.mxu0 0.0
  %745 = vmatpush2.msra.mxu0 0.0
  %746 = vmatprep.subr.mxu0 0.0
  %747 = vmatpush2.msra.mxu0 0.0
  %748 = vmatprep.subr.mxu0 0.0
  %749 = vmatpush2.msra.mxu0 0.0
  %750 = vmatprep.subr.mxu0 0.0
  %751 = vmatpush2.msra.mxu0 0.0
  %752 = vmatprep.subr.mxu0 0.0
  %753 = vmatpush2.msra.mxu0 0.0
  %754 = vmatprep.subr.mxu0 0.0
  %755 = vmatpush2.msra.mxu0 0.0
  %756 = vmatprep.subr.mxu0 0.0
  %757 = vmatpush2.msra.mxu0 0.0
  %758 = vmatprep.subr.mxu0 0.0
  %759 = vmatpush2.msra.mxu0 0.0
  %760 = vmatprep.subr.mxu0 0.0
  %761 = vmatpush2.msra.mxu0 0.0
  %762 = vmatprep.subr.mxu0 0.0
  %763 = vmatpush2.msra.mxu0 0.0
  %764 = vmatprep.subr.mxu0 0.0
  %765 = vmatpush2.msra.mxu0 0.0
  %766 = vmatprep.subr.mxu0 0.0
  %767 = vmatpush2.msra.mxu0 0.0
  %768 = vmatprep.subr.mxu0 0.0
  %769 = vmatpush2.msra.mxu0 0.0
  %770 = vmatprep.subr.mxu0 0.0
  %771 = vmatpush2.msra.mxu0 0.0
  %772 = vmatprep.subr.mxu0 0.0
  %773 = vmatpush2.msra.mxu0 0.0
  %774 = vmatprep.subr.mxu0 0.0
  %775 = vmatpush2.msra.mxu0 0.0
  %776 = vmatprep.mubr.f32.mxu0 0.0
  %777 = vmatmul.mubr.f32.gmra.mxu0 %v630
  %v778 = vpop.f32.mrf.mxu0
  %v779 = vadd.f32 0.0, %v778
  %v780 = vpop.f32.mrf.mxu0
  %v781 = vadd.f32 0.0, %v780
  %782 = vmatprep.mubr.f32.mxu0 0.0
  %783 = vmatmul.mubr.f32.gmra.mxu0 %v633
  %v784 = vpop.f32.mrf.mxu0
  %v785 = vadd.f32 0.0, %v784
  %v786 = vpop.f32.mrf.mxu0
  %v787 = vadd.f32 0.0, %v786
  %788 = vdwg.mxu0
  %789 = vrot.lane.b32.xlu0 %v702, 17
  %v790 = vpop.permute.xlu0 %789
  %791 = vrot.lane.b32.xlu0 %v708, 17
  %v792 = vpop.permute.xlu0 %791
  %793 = vrot.lane.b32.xlu0 %v704, 17
  %v794 = vpop.permute.xlu0 %793
  %795 = vrot.lane.b32.xlu0 %v710, 17
  %v796 = vpop.permute.xlu0 %795
  %797 = vrot.lane.b32.xlu0 %v779, 17
  %v798 = vpop.permute.xlu0 %797
  %799 = vrot.lane.b32.xlu0 %v785, 17
  %v800 = vpop.permute.xlu0 %799
  %801 = vrot.lane.b32.xlu0 %v781, 17
  %v802 = vpop.permute.xlu0 %801
  %803 = vrot.lane.b32.xlu0 %v787, 17
  %v804 = vpop.permute.xlu0 %803
  %v805 = vsel %vm37, %v798, %v802
  %v806 = vsel %vm37, %v800, %v804
  %v807 = vsel %vm37, %v794, %v798
  %v808 = vsel %vm37, %v796, %v800
  %v809 = vsel %vm37, %v790, %v794
  %v810 = vsel %vm37, %v792, %v796
  %v811 = vsel %vm37, %v802, %v790
  %v812 = vsel %vm37, %v804, %v792
  %v813 = vmul.f32 %v811, %v47
  %v814 = vmul.f32 %v809, %v51
  %v815 = vmul.f32 %v807, %v55
  %v816 = vmul.f32 %v805, %v59
  %v817 = vmul.f32 %v812, %v47
  %v818 = vmul.f32 %v810, %v51
  %v819 = vmul.f32 %v808, %v55
  %v820 = vmul.f32 %v806, %v59
  %821 = vrot.lane.b32.xlu0 %v702, 16
  %v822 = vpop.permute.xlu0 %821
  %823 = vrot.lane.b32.xlu0 %v708, 16
  %v824 = vpop.permute.xlu0 %823
  %825 = vrot.lane.b32.xlu0 %v704, 16
  %v826 = vpop.permute.xlu0 %825
  %827 = vrot.lane.b32.xlu0 %v710, 16
  %v828 = vpop.permute.xlu0 %827
  %829 = vrot.lane.b32.xlu0 %v779, 16
  %v830 = vpop.permute.xlu0 %829
  %831 = vrot.lane.b32.xlu0 %v785, 16
  %v832 = vpop.permute.xlu0 %831
  %833 = vrot.lane.b32.xlu0 %v781, 16
  %v834 = vpop.permute.xlu0 %833
  %835 = vrot.lane.b32.xlu0 %v787, 16
  %v836 = vpop.permute.xlu0 %835
  %v837 = vsel %vm76, %v830, %v834
  %v838 = vsel %vm76, %v832, %v836
  %v839 = vsel %vm76, %v826, %v830
  %v840 = vsel %vm76, %v828, %v832
  %v841 = vsel %vm76, %v822, %v826
  %v842 = vsel %vm76, %v824, %v828
  %v843 = vsel %vm76, %v834, %v822
  %v844 = vsel %vm76, %v836, %v824
  %v845 = vmul.f32 %v843, %v87
  %v846 = vmul.f32 %v841, %v91
  %v847 = vmul.f32 %v839, %v95
  %v848 = vmul.f32 %v837, %v99
  %v849 = vmul.f32 %v844, %v87
  %v850 = vmul.f32 %v842, %v91
  %v851 = vmul.f32 %v840, %v95
  %v852 = vmul.f32 %v838, %v99
  %853 = vrot.lane.b32.xlu0 %v702, 15
  %v854 = vpop.permute.xlu0 %853
  %855 = vrot.lane.b32.xlu0 %v708, 15
  %v856 = vpop.permute.xlu0 %855
  %857 = vrot.lane.b32.xlu0 %v704, 15
  %v858 = vpop.permute.xlu0 %857
  %859 = vrot.lane.b32.xlu0 %v710, 15
  %v860 = vpop.permute.xlu0 %859
  %861 = vrot.lane.b32.xlu0 %v779, 15
  %v862 = vpop.permute.xlu0 %861
  %863 = vrot.lane.b32.xlu0 %v785, 15
  %v864 = vpop.permute.xlu0 %863
  %865 = vrot.lane.b32.xlu0 %v781, 15
  %v866 = vpop.permute.xlu0 %865
  %867 = vrot.lane.b32.xlu0 %v787, 15
  %v868 = vpop.permute.xlu0 %867
  %v869 = vsel %vm116, %v862, %v866
  %v870 = vsel %vm116, %v864, %v868
  %v871 = vsel %vm116, %v858, %v862
  %v872 = vsel %vm116, %v860, %v864
  %v873 = vsel %vm116, %v854, %v858
  %v874 = vsel %vm116, %v856, %v860
  %v875 = vsel %vm116, %v866, %v854
  %v876 = vsel %vm116, %v868, %v856
  %v877 = vmul.f32 %v875, %v127
  %v878 = vmul.f32 %v873, %v131
  %v879 = vmul.f32 %v871, %v135
  %v880 = vmul.f32 %v869, %v139
  %v881 = vmul.f32 %v876, %v127
  %v882 = vmul.f32 %v874, %v131
  %v883 = vmul.f32 %v872, %v135
  %v884 = vmul.f32 %v870, %v139
  %885 = vrot.lane.b32.xlu0 %v702, 1
  %v886 = vpop.permute.xlu0 %885
  %887 = vrot.lane.b32.xlu0 %v708, 1
  %v888 = vpop.permute.xlu0 %887
  %889 = vrot.lane.b32.xlu0 %v704, 1
  %v890 = vpop.permute.xlu0 %889
  %891 = vrot.lane.b32.xlu0 %v710, 1
  %v892 = vpop.permute.xlu0 %891
  %893 = vrot.lane.b32.xlu0 %v779, 1
  %v894 = vpop.permute.xlu0 %893
  %895 = vrot.lane.b32.xlu0 %v785, 1
  %v896 = vpop.permute.xlu0 %895
  %897 = vrot.lane.b32.xlu0 %v781, 1
  %v898 = vpop.permute.xlu0 %897
  %899 = vrot.lane.b32.xlu0 %v787, 1
  %v900 = vpop.permute.xlu0 %899
  %v901 = vsel %vm156, %v894, %v898
  %v902 = vsel %vm156, %v896, %v900
  %v903 = vsel %vm156, %v890, %v894
  %v904 = vsel %vm156, %v892, %v896
  %v905 = vsel %vm156, %v886, %v890
  %v906 = vsel %vm156, %v888, %v892
  %v907 = vsel %vm156, %v898, %v886
  %v908 = vsel %vm156, %v900, %v888
  %v909 = vmul.f32 %v907, %v167
  %v910 = vmul.f32 %v905, %v171
  %v911 = vmul.f32 %v903, %v175
  %v912 = vmul.f32 %v901, %v179
  %v913 = vmul.f32 %v908, %v167
  %v914 = vmul.f32 %v906, %v171
  %v915 = vmul.f32 %v904, %v175
  %v916 = vmul.f32 %v902, %v179
  %917 = vrot.lane.b32.xlu0 %v702, 127
  %v918 = vpop.permute.xlu0 %917
  %919 = vrot.lane.b32.xlu0 %v708, 127
  %v920 = vpop.permute.xlu0 %919
  %921 = vrot.lane.b32.xlu0 %v704, 127
  %v922 = vpop.permute.xlu0 %921
  %923 = vrot.lane.b32.xlu0 %v710, 127
  %v924 = vpop.permute.xlu0 %923
  %925 = vrot.lane.b32.xlu0 %v779, 127
  %v926 = vpop.permute.xlu0 %925
  %927 = vrot.lane.b32.xlu0 %v785, 127
  %v928 = vpop.permute.xlu0 %927
  %929 = vrot.lane.b32.xlu0 %v781, 127
  %v930 = vpop.permute.xlu0 %929
  %931 = vrot.lane.b32.xlu0 %v787, 127
  %v932 = vpop.permute.xlu0 %931
  %v933 = vsel %vm196, %v926, %v930
  %v934 = vsel %vm196, %v928, %v932
  %v935 = vsel %vm196, %v922, %v926
  %v936 = vsel %vm196, %v924, %v928
  %v937 = vsel %vm196, %v918, %v922
  %v938 = vsel %vm196, %v920, %v924
  %v939 = vsel %vm196, %v930, %v918
  %v940 = vsel %vm196, %v932, %v920
  %v941 = vmul.f32 %v937, %v207
  %v942 = vmul.f32 %v935, %v211
  %v943 = vmul.f32 %v933, %v215
  %v944 = vmul.f32 %v939, %v219
  %v945 = vmul.f32 %v938, %v207
  %v946 = vmul.f32 %v936, %v211
  %v947 = vmul.f32 %v934, %v215
  %v948 = vmul.f32 %v940, %v219
  %949 = vrot.lane.b32.xlu0 %v702, 113
  %v950 = vpop.permute.xlu0 %949
  %951 = vrot.lane.b32.xlu0 %v708, 113
  %v952 = vpop.permute.xlu0 %951
  %953 = vrot.lane.b32.xlu0 %v704, 113
  %v954 = vpop.permute.xlu0 %953
  %955 = vrot.lane.b32.xlu0 %v710, 113
  %v956 = vpop.permute.xlu0 %955
  %957 = vrot.lane.b32.xlu0 %v779, 113
  %v958 = vpop.permute.xlu0 %957
  %959 = vrot.lane.b32.xlu0 %v785, 113
  %v960 = vpop.permute.xlu0 %959
  %961 = vrot.lane.b32.xlu0 %v781, 113
  %v962 = vpop.permute.xlu0 %961
  %963 = vrot.lane.b32.xlu0 %v787, 113
  %v964 = vpop.permute.xlu0 %963
  %v965 = vsel %vm236, %v958, %v962
  %v966 = vsel %vm236, %v960, %v964
  %v967 = vsel %vm236, %v954, %v958
  %v968 = vsel %vm236, %v956, %v960
  %v969 = vsel %vm236, %v950, %v954
  %v970 = vsel %vm236, %v952, %v956
  %v971 = vsel %vm236, %v962, %v950
  %v972 = vsel %vm236, %v964, %v952
  %v973 = vmul.f32 %v969, %v247
  %v974 = vmul.f32 %v967, %v251
  %v975 = vmul.f32 %v965, %v255
  %v976 = vmul.f32 %v971, %v259
  %v977 = vmul.f32 %v970, %v247
  %v978 = vmul.f32 %v968, %v251
  %v979 = vmul.f32 %v966, %v255
  %v980 = vmul.f32 %v972, %v259
  %981 = vrot.lane.b32.xlu0 %v702, 112
  %v982 = vpop.permute.xlu0 %981
  %983 = vrot.lane.b32.xlu0 %v708, 112
  %v984 = vpop.permute.xlu0 %983
  %985 = vrot.lane.b32.xlu0 %v704, 112
  %v986 = vpop.permute.xlu0 %985
  %987 = vrot.lane.b32.xlu0 %v710, 112
  %v988 = vpop.permute.xlu0 %987
  %989 = vrot.lane.b32.xlu0 %v779, 112
  %v990 = vpop.permute.xlu0 %989
  %991 = vrot.lane.b32.xlu0 %v785, 112
  %v992 = vpop.permute.xlu0 %991
  %993 = vrot.lane.b32.xlu0 %v781, 112
  %v994 = vpop.permute.xlu0 %993
  %995 = vrot.lane.b32.xlu0 %v787, 112
  %v996 = vpop.permute.xlu0 %995
  %v997 = vsel %vm276, %v990, %v994
  %v998 = vsel %vm276, %v992, %v996
  %v999 = vsel %vm276, %v986, %v990
  %v1000 = vsel %vm276, %v988, %v992
  %v1001 = vsel %vm276, %v982, %v986
  %v1002 = vsel %vm276, %v984, %v988
  %v1003 = vsel %vm276, %v994, %v982
  %v1004 = vsel %vm276, %v996, %v984
  %v1005 = vmul.f32 %v1001, %v287
  %v1006 = vmul.f32 %v999, %v291
  %v1007 = vmul.f32 %v997, %v295
  %v1008 = vmul.f32 %v1003, %v299
  %v1009 = vmul.f32 %v1002, %v287
  %v1010 = vmul.f32 %v1000, %v291
  %v1011 = vmul.f32 %v998, %v295
  %v1012 = vmul.f32 %v1004, %v299
  %1013 = vrot.lane.b32.xlu0 %v702, 111
  %v1014 = vpop.permute.xlu0 %1013
  %1015 = vrot.lane.b32.xlu0 %v708, 111
  %v1016 = vpop.permute.xlu0 %1015
  %1017 = vrot.lane.b32.xlu0 %v704, 111
  %v1018 = vpop.permute.xlu0 %1017
  %1019 = vrot.lane.b32.xlu0 %v710, 111
  %v1020 = vpop.permute.xlu0 %1019
  %1021 = vrot.lane.b32.xlu0 %v779, 111
  %v1022 = vpop.permute.xlu0 %1021
  %1023 = vrot.lane.b32.xlu0 %v785, 111
  %v1024 = vpop.permute.xlu0 %1023
  %1025 = vrot.lane.b32.xlu0 %v781, 111
  %v1026 = vpop.permute.xlu0 %1025
  %1027 = vrot.lane.b32.xlu0 %v787, 111
  %v1028 = vpop.permute.xlu0 %1027
  %v1029 = vsel %vm316, %v1022, %v1026
  %v1030 = vsel %vm316, %v1024, %v1028
  %v1031 = vsel %vm316, %v1018, %v1022
  %v1032 = vsel %vm316, %v1020, %v1024
  %v1033 = vsel %vm316, %v1014, %v1018
  %v1034 = vsel %vm316, %v1016, %v1020
  %v1035 = vsel %vm316, %v1026, %v1014
  %v1036 = vsel %vm316, %v1028, %v1016
  %v1037 = vmul.f32 %v1033, %v327
  %v1038 = vmul.f32 %v1031, %v331
  %v1039 = vmul.f32 %v1029, %v335
  %v1040 = vmul.f32 %v1035, %v339
  %v1041 = vmul.f32 %v1034, %v327
  %v1042 = vmul.f32 %v1032, %v331
  %v1043 = vmul.f32 %v1030, %v335
  %v1044 = vmul.f32 %v1036, %v339
  %v1045 = vld [vmem:[%s4] sm:$0xff]
  %v1046 = vld [vmem:[%s4 + $0x8] sm:$0xff]
  %vm1047 = vcmask 195584
  %v1049 = vsel %vm1047, %v1046, 0
  %1051 = vmatprep.subr.mxu0 %v1010
  %1052 = vmatpush1.msra.mxu0 %v1009
  %1053 = vmatprep.subr.mxu0 %v1006
  %1054 = vmatpush1.msra.mxu0 %v1005
  %1055 = vmatprep.subr.mxu0 %v978
  %1056 = vmatpush1.msra.mxu0 %v977
  %1057 = vmatprep.subr.mxu0 %v974
  %1058 = vmatpush1.msra.mxu0 %v973
  %1059 = vmatprep.subr.mxu0 %v946
  %1060 = vmatpush1.msra.mxu0 %v945
  %1061 = vmatprep.subr.mxu0 %v942
  %1062 = vmatpush1.msra.mxu0 %v941
  %1063 = vmatprep.subr.mxu0 %v710
  %1064 = vmatpush1.msra.mxu0 %v708
  %1065 = vmatprep.subr.mxu0 %v704
  %1066 = vmatpush1.msra.mxu0 %v702
  %1067 = vmatprep.subr.mxu0 %v914
  %1068 = vmatpush1.msra.mxu0 %v913
  %1069 = vmatprep.subr.mxu0 %v910
  %1070 = vmatpush1.msra.mxu0 %v909
  %1071 = vmatprep.subr.mxu0 %v882
  %1072 = vmatpush1.msra.mxu0 %v881
  %1073 = vmatprep.subr.mxu0 %v878
  %1074 = vmatpush1.msra.mxu0 %v877
  %1075 = vmatprep.subr.mxu0 %v850
  %1076 = vmatpush1.msra.mxu0 %v849
  %1077 = vmatprep.subr.mxu0 %v846
  %1078 = vmatpush1.msra.mxu0 %v845
  %1079 = vmatprep.subr.mxu0 %v818
  %1080 = vmatpush1.msra.mxu0 %v817
  %1081 = vmatprep.subr.mxu0 %v814
  %1082 = vmatpush1.msra.mxu0 %v813
  %1083 = vmatprep.subr.mxu0 0.0
  %1084 = vmatpush2.msra.mxu0 0.0
  %1085 = vmatprep.subr.mxu0 0.0
  %1086 = vmatpush2.msra.mxu0 0.0
  %1087 = vmatprep.subr.mxu0 0.0
  %1088 = vmatpush2.msra.mxu0 0.0
  %1089 = vmatprep.subr.mxu0 0.0
  %1090 = vmatpush2.msra.mxu0 0.0
  %1091 = vmatprep.subr.mxu0 0.0
  %1092 = vmatpush2.msra.mxu0 0.0
  %1093 = vmatprep.subr.mxu0 0.0
  %1094 = vmatpush2.msra.mxu0 0.0
  %1095 = vmatprep.subr.mxu0 0.0
  %1096 = vmatpush2.msra.mxu0 0.0
  %1097 = vmatprep.subr.mxu0 0.0
  %1098 = vmatpush2.msra.mxu0 0.0
  %1099 = vmatprep.subr.mxu0 0.0
  %1100 = vmatpush2.msra.mxu0 0.0
  %1101 = vmatprep.subr.mxu0 0.0
  %1102 = vmatpush2.msra.mxu0 0.0
  %1103 = vmatprep.subr.mxu0 0.0
  %1104 = vmatpush2.msra.mxu0 0.0
  %1105 = vmatprep.subr.mxu0 0.0
  %1106 = vmatpush2.msra.mxu0 0.0
  %1107 = vmatprep.subr.mxu0 0.0
  %1108 = vmatpush2.msra.mxu0 0.0
  %1109 = vmatprep.subr.mxu0 1.0
  %1110 = vmatpush2.msra.mxu0 1.0
  %1111 = vmatprep.subr.mxu0 %v1042
  %1112 = vmatpush2.msra.mxu0 %v1041
  %1113 = vmatprep.subr.mxu0 %v1038
  %1114 = vmatpush2.msra.mxu0 %v1037
  %1115 = vmatprep.mubr.f32.mxu0 %v1049
  %1116 = vmatmul.mubr.f32.gmra.mxu0 %v1045
  %v1117 = vpop.f32.mrf.mxu0
  %v1118 = vadd.f32 0.0, %v1117
  %v1119 = vpop.f32.mrf.mxu0
  %v1120 = vadd.f32 0.0, %v1119
  %1121 = vdwg.mxu0
  %1122 = vmatprep.subr.mxu0 %v1012
  %1123 = vmatpush1.msra.mxu0 %v1011
  %1124 = vmatprep.subr.mxu0 %v1008
  %1125 = vmatpush1.msra.mxu0 %v1007
  %1126 = vmatprep.subr.mxu0 %v980
  %1127 = vmatpush1.msra.mxu0 %v979
  %1128 = vmatprep.subr.mxu0 %v976
  %1129 = vmatpush1.msra.mxu0 %v975
  %1130 = vmatprep.subr.mxu0 %v948
  %1131 = vmatpush1.msra.mxu0 %v947
  %1132 = vmatprep.subr.mxu0 %v944
  %1133 = vmatpush1.msra.mxu0 %v943
  %1134 = vmatprep.subr.mxu0 %v787
  %1135 = vmatpush1.msra.mxu0 %v785
  %1136 = vmatprep.subr.mxu0 %v781
  %1137 = vmatpush1.msra.mxu0 %v779
  %1138 = vmatprep.subr.mxu0 %v916
  %1139 = vmatpush1.msra.mxu0 %v915
  %1140 = vmatprep.subr.mxu0 %v912
  %1141 = vmatpush1.msra.mxu0 %v911
  %1142 = vmatprep.subr.mxu0 %v884
  %1143 = vmatpush1.msra.mxu0 %v883
  %1144 = vmatprep.subr.mxu0 %v880
  %1145 = vmatpush1.msra.mxu0 %v879
  %1146 = vmatprep.subr.mxu0 %v852
  %1147 = vmatpush1.msra.mxu0 %v851
  %1148 = vmatprep.subr.mxu0 %v848
  %1149 = vmatpush1.msra.mxu0 %v847
  %1150 = vmatprep.subr.mxu0 %v820
  %1151 = vmatpush1.msra.mxu0 %v819
  %1152 = vmatprep.subr.mxu0 %v816
  %1153 = vmatpush1.msra.mxu0 %v815
  %1154 = vmatprep.subr.mxu0 0.0
  %1155 = vmatpush2.msra.mxu0 0.0
  %1156 = vmatprep.subr.mxu0 0.0
  %1157 = vmatpush2.msra.mxu0 0.0
  %1158 = vmatprep.subr.mxu0 0.0
  %1159 = vmatpush2.msra.mxu0 0.0
  %1160 = vmatprep.subr.mxu0 0.0
  %1161 = vmatpush2.msra.mxu0 0.0
  %1162 = vmatprep.subr.mxu0 0.0
  %1163 = vmatpush2.msra.mxu0 0.0
  %1164 = vmatprep.subr.mxu0 0.0
  %1165 = vmatpush2.msra.mxu0 0.0
  %1166 = vmatprep.subr.mxu0 0.0
  %1167 = vmatpush2.msra.mxu0 0.0
  %1168 = vmatprep.subr.mxu0 0.0
  %1169 = vmatpush2.msra.mxu0 0.0
  %1170 = vmatprep.subr.mxu0 0.0
  %1171 = vmatpush2.msra.mxu0 0.0
  %1172 = vmatprep.subr.mxu0 0.0
  %1173 = vmatpush2.msra.mxu0 0.0
  %1174 = vmatprep.subr.mxu0 0.0
  %1175 = vmatpush2.msra.mxu0 0.0
  %1176 = vmatprep.subr.mxu0 0.0
  %1177 = vmatpush2.msra.mxu0 0.0
  %1178 = vmatprep.subr.mxu0 0.0
  %1179 = vmatpush2.msra.mxu0 0.0
  %1180 = vmatprep.subr.mxu0 1.0
  %1181 = vmatpush2.msra.mxu0 1.0
  %1182 = vmatprep.subr.mxu0 %v1044
  %1183 = vmatpush2.msra.mxu0 %v1043
  %1184 = vmatprep.subr.mxu0 %v1040
  %1185 = vmatpush2.msra.mxu0 %v1039
  %1186 = vmatprep.mubr.f32.mxu0 %v1049
  %1187 = vmatmul.mubr.f32.gmra.mxu0 %v1045
  %v1188 = vpop.f32.mrf.mxu0
  %v1189 = vadd.f32 0.0, %v1188
  %v1190 = vpop.f32.mrf.mxu0
  %v1191 = vadd.f32 0.0, %v1190
  %1192 = vdwg.mxu0
  %v1193 = vmax.f32 %v1118, 0.0
  %v1194 = vmax.f32 %v1120, 0.0
  %v1195 = vmax.f32 %v1189, 0.0
  %v1196 = vmax.f32 %v1191, 0.0
  %1197 = vrot.lane.b32.xlu0 %v1193, 17
  %v1198 = vpop.permute.xlu0 %1197
  %1199 = vrot.lane.b32.xlu0 %v1194, 17
  %v1200 = vpop.permute.xlu0 %1199
  %1201 = vrot.lane.b32.xlu0 %v1195, 17
  %v1202 = vpop.permute.xlu0 %1201
  %1203 = vrot.lane.b32.xlu0 %v1196, 17
  %v1204 = vpop.permute.xlu0 %1203
  %v1205 = vsel %vm37, %v1202, %v1204
  %v1206 = vsel %vm37, %v1200, %v1202
  %v1207 = vsel %vm37, %v1198, %v1200
  %v1208 = vsel %vm37, %v1204, %v1198
  %v1209 = vmul.f32 %v1208, %v47
  %v1210 = vmul.f32 %v1207, %v51
  %v1211 = vmul.f32 %v1206, %v55
  %v1212 = vmul.f32 %v1205, %v59
  %1213 = vrot.lane.b32.xlu0 %v1193, 16
  %v1214 = vpop.permute.xlu0 %1213
  %1215 = vrot.lane.b32.xlu0 %v1194, 16
  %v1216 = vpop.permute.xlu0 %1215
  %1217 = vrot.lane.b32.xlu0 %v1195, 16
  %v1218 = vpop.permute.xlu0 %1217
  %1219 = vrot.lane.b32.xlu0 %v1196, 16
  %v1220 = vpop.permute.xlu0 %1219
  %v1221 = vsel %vm76, %v1218, %v1220
  %v1222 = vsel %vm76, %v1216, %v1218
  %v1223 = vsel %vm76, %v1214, %v1216
  %v1224 = vsel %vm76, %v1220, %v1214
  %v1225 = vmul.f32 %v1224, %v87
  %v1226 = vmul.f32 %v1223, %v91
  %v1227 = vmul.f32 %v1222, %v95
  %v1228 = vmul.f32 %v1221, %v99
  %1229 = vrot.lane.b32.xlu0 %v1193, 15
  %v1230 = vpop.permute.xlu0 %1229
  %1231 = vrot.lane.b32.xlu0 %v1194, 15
  %v1232 = vpop.permute.xlu0 %1231
  %1233 = vrot.lane.b32.xlu0 %v1195, 15
  %v1234 = vpop.permute.xlu0 %1233
  %1235 = vrot.lane.b32.xlu0 %v1196, 15
  %v1236 = vpop.permute.xlu0 %1235
  %v1237 = vsel %vm116, %v1234, %v1236
  %v1238 = vsel %vm116, %v1232, %v1234
  %v1239 = vsel %vm116, %v1230, %v1232
  %v1240 = vsel %vm116, %v1236, %v1230
  %v1241 = vmul.f32 %v1240, %v127
  %v1242 = vmul.f32 %v1239, %v131
  %v1243 = vmul.f32 %v1238, %v135
  %v1244 = vmul.f32 %v1237, %v139
  %1245 = vrot.lane.b32.xlu0 %v1193, 1
  %v1246 = vpop.permute.xlu0 %1245
  %1247 = vrot.lane.b32.xlu0 %v1194, 1
  %v1248 = vpop.permute.xlu0 %1247
  %1249 = vrot.lane.b32.xlu0 %v1195, 1
  %v1250 = vpop.permute.xlu0 %1249
  %1251 = vrot.lane.b32.xlu0 %v1196, 1
  %v1252 = vpop.permute.xlu0 %1251
  %v1253 = vsel %vm156, %v1250, %v1252
  %v1254 = vsel %vm156, %v1248, %v1250
  %v1255 = vsel %vm156, %v1246, %v1248
  %v1256 = vsel %vm156, %v1252, %v1246
  %v1257 = vmul.f32 %v1256, %v167
  %v1258 = vmul.f32 %v1255, %v171
  %v1259 = vmul.f32 %v1254, %v175
  %v1260 = vmul.f32 %v1253, %v179
  %1261 = vrot.lane.b32.xlu0 %v1193, 127
  %v1262 = vpop.permute.xlu0 %1261
  %1263 = vrot.lane.b32.xlu0 %v1194, 127
  %v1264 = vpop.permute.xlu0 %1263
  %1265 = vrot.lane.b32.xlu0 %v1195, 127
  %v1266 = vpop.permute.xlu0 %1265
  %1267 = vrot.lane.b32.xlu0 %v1196, 127
  %v1268 = vpop.permute.xlu0 %1267
  %v1269 = vsel %vm196, %v1266, %v1268
  %v1270 = vsel %vm196, %v1264, %v1266
  %v1271 = vsel %vm196, %v1262, %v1264
  %v1272 = vsel %vm196, %v1268, %v1262
  %v1273 = vmul.f32 %v1271, %v207
  %v1274 = vmul.f32 %v1270, %v211
  %v1275 = vmul.f32 %v1269, %v215
  %v1276 = vmul.f32 %v1272, %v219
  %1277 = vrot.lane.b32.xlu0 %v1193, 113
  %v1278 = vpop.permute.xlu0 %1277
  %1279 = vrot.lane.b32.xlu0 %v1194, 113
  %v1280 = vpop.permute.xlu0 %1279
  %1281 = vrot.lane.b32.xlu0 %v1195, 113
  %v1282 = vpop.permute.xlu0 %1281
  %1283 = vrot.lane.b32.xlu0 %v1196, 113
  %v1284 = vpop.permute.xlu0 %1283
  %v1285 = vsel %vm236, %v1282, %v1284
  %v1286 = vsel %vm236, %v1280, %v1282
  %v1287 = vsel %vm236, %v1278, %v1280
  %v1288 = vsel %vm236, %v1284, %v1278
  %v1289 = vmul.f32 %v1287, %v247
  %v1290 = vmul.f32 %v1286, %v251
  %v1291 = vmul.f32 %v1285, %v255
  %v1292 = vmul.f32 %v1288, %v259
  %1293 = vrot.lane.b32.xlu0 %v1193, 112
  %v1294 = vpop.permute.xlu0 %1293
  %1295 = vrot.lane.b32.xlu0 %v1194, 112
  %v1296 = vpop.permute.xlu0 %1295
  %1297 = vrot.lane.b32.xlu0 %v1195, 112
  %v1298 = vpop.permute.xlu0 %1297
  %1299 = vrot.lane.b32.xlu0 %v1196, 112
  %v1300 = vpop.permute.xlu0 %1299
  %v1301 = vsel %vm276, %v1298, %v1300
  %v1302 = vsel %vm276, %v1296, %v1298
  %v1303 = vsel %vm276, %v1294, %v1296
  %v1304 = vsel %vm276, %v1300, %v1294
  %v1305 = vmul.f32 %v1303, %v287
  %v1306 = vmul.f32 %v1302, %v291
  %v1307 = vmul.f32 %v1301, %v295
  %v1308 = vmul.f32 %v1304, %v299
  %1309 = vrot.lane.b32.xlu0 %v1193, 111
  %v1310 = vpop.permute.xlu0 %1309
  %1311 = vrot.lane.b32.xlu0 %v1194, 111
  %v1312 = vpop.permute.xlu0 %1311
  %1313 = vrot.lane.b32.xlu0 %v1195, 111
  %v1314 = vpop.permute.xlu0 %1313
  %1315 = vrot.lane.b32.xlu0 %v1196, 111
  %v1316 = vpop.permute.xlu0 %1315
  %v1317 = vsel %vm316, %v1314, %v1316
  %v1318 = vsel %vm316, %v1312, %v1314
  %v1319 = vsel %vm316, %v1310, %v1312
  %v1320 = vsel %vm316, %v1316, %v1310
  %v1321 = vmul.f32 %v1319, %v327
  %v1322 = vmul.f32 %v1318, %v331
  %v1323 = vmul.f32 %v1317, %v335
  %v1324 = vmul.f32 %v1320, %v339
  %v1325 = vld [vmem:[%s5] sm:$0xff]
  %v1327 = vsel %vm349, %v1325, 0
  %1329 = vmatprep.subr.mxu0 0.0
  %1330 = vmatpush1.msra.mxu0 0.0
  %1331 = vmatprep.subr.mxu0 0.0
  %1332 = vmatpush1.msra.mxu0 0.0
  %1333 = vmatprep.subr.mxu0 0.0
  %1334 = vmatpush1.msra.mxu0 0.0
  %1335 = vmatprep.subr.mxu0 0.0
  %1336 = vmatpush1.msra.mxu0 0.0
  %1337 = vmatprep.subr.mxu0 0.0
  %1338 = vmatpush1.msra.mxu0 0.0
  %1339 = vmatprep.subr.mxu0 0.0
  %1340 = vmatpush1.msra.mxu0 0.0
  %1341 = vmatprep.subr.mxu0 1.0
  %1342 = vmatpush1.msra.mxu0 1.0
  %1343 = vmatprep.subr.mxu0 %v1322
  %1344 = vmatpush1.msra.mxu0 %v1321
  %1345 = vmatprep.subr.mxu0 %v1306
  %1346 = vmatpush1.msra.mxu0 %v1305
  %1347 = vmatprep.subr.mxu0 %v1290
  %1348 = vmatpush1.msra.mxu0 %v1289
  %1349 = vmatprep.subr.mxu0 %v1274
  %1350 = vmatpush1.msra.mxu0 %v1273
  %1351 = vmatprep.subr.mxu0 %v1194
  %1352 = vmatpush1.msra.mxu0 %v1193
  %1353 = vmatprep.subr.mxu0 %v1258
  %1354 = vmatpush1.msra.mxu0 %v1257
  %1355 = vmatprep.subr.mxu0 %v1242
  %1356 = vmatpush1.msra.mxu0 %v1241
  %1357 = vmatprep.subr.mxu0 %v1226
  %1358 = vmatpush1.msra.mxu0 %v1225
  %1359 = vmatprep.subr.mxu0 %v1210
  %1360 = vmatpush1.msra.mxu0 %v1209
  %1361 = vmatprep.subr.mxu0 0.0
  %1362 = vmatpush2.msra.mxu0 0.0
  %1363 = vmatprep.subr.mxu0 0.0
  %1364 = vmatpush2.msra.mxu0 0.0
  %1365 = vmatprep.subr.mxu0 0.0
  %1366 = vmatpush2.msra.mxu0 0.0
  %1367 = vmatprep.subr.mxu0 0.0
  %1368 = vmatpush2.msra.mxu0 0.0
  %1369 = vmatprep.subr.mxu0 0.0
  %1370 = vmatpush2.msra.mxu0 0.0
  %1371 = vmatprep.subr.mxu0 0.0
  %1372 = vmatpush2.msra.mxu0 0.0
  %1373 = vmatprep.subr.mxu0 0.0
  %1374 = vmatpush2.msra.mxu0 0.0
  %1375 = vmatprep.subr.mxu0 0.0
  %1376 = vmatpush2.msra.mxu0 0.0
  %1377 = vmatprep.subr.mxu0 0.0
  %1378 = vmatpush2.msra.mxu0 0.0
  %1379 = vmatprep.subr.mxu0 0.0
  %1380 = vmatpush2.msra.mxu0 0.0
  %1381 = vmatprep.subr.mxu0 0.0
  %1382 = vmatpush2.msra.mxu0 0.0
  %1383 = vmatprep.subr.mxu0 0.0
  %1384 = vmatpush2.msra.mxu0 0.0
  %1385 = vmatprep.subr.mxu0 0.0
  %1386 = vmatpush2.msra.mxu0 0.0
  %1387 = vmatprep.subr.mxu0 0.0
  %1388 = vmatpush2.msra.mxu0 0.0
  %1389 = vmatprep.subr.mxu0 0.0
  %1390 = vmatpush2.msra.mxu0 0.0
  %1391 = vmatprep.subr.mxu0 0.0
  %1392 = vmatpush2.msra.mxu0 0.0
  %1393 = vmatprep.mubr.f32.mxu0 0.0
  %1394 = vmatmul.mubr.f32.gmra.mxu0 %v1327
  %v1395 = vpop.f32.mrf.mxu0
  %v1396 = vadd.f32 0.0, %v1395
  %v1397 = vpop.f32.mrf.mxu0
  %v1398 = vadd.f32 0.0, %v1397
  %1399 = vdwg.mxu0
  %1400 = vmatprep.subr.mxu0 0.0
  %1401 = vmatpush1.msra.mxu0 0.0
  %1402 = vmatprep.subr.mxu0 0.0
  %1403 = vmatpush1.msra.mxu0 0.0
  %1404 = vmatprep.subr.mxu0 0.0
  %1405 = vmatpush1.msra.mxu0 0.0
  %1406 = vmatprep.subr.mxu0 0.0
  %1407 = vmatpush1.msra.mxu0 0.0
  %1408 = vmatprep.subr.mxu0 0.0
  %1409 = vmatpush1.msra.mxu0 0.0
  %1410 = vmatprep.subr.mxu0 0.0
  %1411 = vmatpush1.msra.mxu0 0.0
  %1412 = vmatprep.subr.mxu0 1.0
  %1413 = vmatpush1.msra.mxu0 1.0
  %1414 = vmatprep.subr.mxu0 %v1324
  %1415 = vmatpush1.msra.mxu0 %v1323
  %1416 = vmatprep.subr.mxu0 %v1308
  %1417 = vmatpush1.msra.mxu0 %v1307
  %1418 = vmatprep.subr.mxu0 %v1292
  %1419 = vmatpush1.msra.mxu0 %v1291
  %1420 = vmatprep.subr.mxu0 %v1276
  %1421 = vmatpush1.msra.mxu0 %v1275
  %1422 = vmatprep.subr.mxu0 %v1196
  %1423 = vmatpush1.msra.mxu0 %v1195
  %1424 = vmatprep.subr.mxu0 %v1260
  %1425 = vmatpush1.msra.mxu0 %v1259
  %1426 = vmatprep.subr.mxu0 %v1244
  %1427 = vmatpush1.msra.mxu0 %v1243
  %1428 = vmatprep.subr.mxu0 %v1228
  %1429 = vmatpush1.msra.mxu0 %v1227
  %1430 = vmatprep.subr.mxu0 %v1212
  %1431 = vmatpush1.msra.mxu0 %v1211
  %1432 = vmatprep.subr.mxu0 0.0
  %1433 = vmatpush2.msra.mxu0 0.0
  %1434 = vmatprep.subr.mxu0 0.0
  %1435 = vmatpush2.msra.mxu0 0.0
  %1436 = vmatprep.subr.mxu0 0.0
  %1437 = vmatpush2.msra.mxu0 0.0
  %1438 = vmatprep.subr.mxu0 0.0
  %1439 = vmatpush2.msra.mxu0 0.0
  %1440 = vmatprep.subr.mxu0 0.0
  %1441 = vmatpush2.msra.mxu0 0.0
  %1442 = vmatprep.subr.mxu0 0.0
  %1443 = vmatpush2.msra.mxu0 0.0
  %1444 = vmatprep.subr.mxu0 0.0
  %1445 = vmatpush2.msra.mxu0 0.0
  %1446 = vmatprep.subr.mxu0 0.0
  %1447 = vmatpush2.msra.mxu0 0.0
  %1448 = vmatprep.subr.mxu0 0.0
  %1449 = vmatpush2.msra.mxu0 0.0
  %1450 = vmatprep.subr.mxu0 0.0
  %1451 = vmatpush2.msra.mxu0 0.0
  %1452 = vmatprep.subr.mxu0 0.0
  %1453 = vmatpush2.msra.mxu0 0.0
  %1454 = vmatprep.subr.mxu0 0.0
  %1455 = vmatpush2.msra.mxu0 0.0
  %1456 = vmatprep.subr.mxu0 0.0
  %1457 = vmatpush2.msra.mxu0 0.0
  %1458 = vmatprep.subr.mxu0 0.0
  %1459 = vmatpush2.msra.mxu0 0.0
  %1460 = vmatprep.subr.mxu0 0.0
  %1461 = vmatpush2.msra.mxu0 0.0
  %1462 = vmatprep.subr.mxu0 0.0
  %1463 = vmatpush2.msra.mxu0 0.0
  %1464 = vmatprep.mubr.f32.mxu0 0.0
  %1465 = vmatmul.mubr.f32.gmra.mxu0 %v1327
  %v1466 = vpop.f32.mrf.mxu0
  %v1467 = vadd.f32 0.0, %v1466
  %v1468 = vpop.f32.mrf.mxu0
  %v1469 = vadd.f32 0.0, %v1468
  %1470 = vdwg.mxu0
  %v1471 = vxor.u32 %v1396, 2147483648
  %v1472 = vxor.u32 %v1398, 2147483648
  %v1473 = vxor.u32 %v1467, 2147483648
  %v1474 = vxor.u32 %v1469, 2147483648
  %v1475 = vmul.f32 %v1471, 1.442695
  %v1476 = vpow.pop %v1475
  %v1477 = vmul.f32 %v1472, 1.442695
  %v1478 = vpow.pop %v1477
  %v1479 = vmul.f32 %v1473, 1.442695
  %v1480 = vpow.pop %v1479
  %v1481 = vmul.f32 %v1474, 1.442695
  %v1482 = vpow.pop %v1481
  %v1483 = vadd.f32 %v1476, 1.0
  %v1484 = vadd.f32 %v1478, 1.0
  %v1485 = vadd.f32 %v1480, 1.0
  %v1486 = vadd.f32 %v1482, 1.0
  %v1487 = vrcp.pop %v1483
  %v1488 = vmul.f32 1.0, %v1487
  %v1489 = vrcp.pop %v1484
  %v1490 = vmul.f32 1.0, %v1489
  %v1491 = vrcp.pop %v1485
  %v1492 = vmul.f32 1.0, %v1491
  %v1493 = vrcp.pop %v1486
  %v1494 = vmul.f32 1.0, %v1493
  %1495 = vst [vmem:[%s6] sm:$0xff] %v1488
  %1496 = vst [vmem:[%s6 + $0x8] sm:$0xff] %v1490
  %1497 = vst [vmem:[%s6 + $0x10] sm:$0xff] %v1492
  %1498 = vst [vmem:[%s6 + $0x18] sm:$0xff] %v1494
  // Predicated region
  $region26: #{simple_autoencoder_forward.1} parent=0 // pred_check
    _
  $region27: #{simple_autoencoder_forward.1} parent=0 // pred_check_branch
    %1500 = sbr.rel (0) target = $region29
  $region28: #{simple_autoencoder_forward.1} parent=0 // pred_region
    _
  $region29: #{simple_autoencoder_forward.1} parent=0 // pred_fallthru
    _
  // Predicated region
  $region30: #{simple_autoencoder_forward.1} parent=0 // pred_check
    _
  $region31: #{simple_autoencoder_forward.1} parent=0 // pred_check_branch
    %1502 = sbr.rel (0) target = $region33
  $region32: #{simple_autoencoder_forward.1} parent=0 // pred_region
    _
  $region33: #{simple_autoencoder_forward.1} parent=0 // pred_fallthru
    _

</llo_original>
